<compile_context>
chip_gen: v5e
topology: v5e:2x2
jax: 0.10.0
libtpu: 0.0.40
codegen_flags: <defaults>
</compile_context>

<pallas_src>
import jax
import jax.numpy as jnp
from jax import lax
from jax.experimental import pallas as pl
from jax.experimental.pallas import tpu as pltpu

EPS = 1e-5                      # PyTorch BatchNorm2d default
_MXU_DTYPE = jnp.float32        # keep f32 (matches module numerics, v5e has no
                                # bf16 VPU path); flip the dot operands to bf16
                                # on v6e/v7x once channels are >=128
_VMEM_LIMIT = 48 * 1024 * 1024  # scoped-VMEM cap: v7x (64 MiB physical) with
                                # headroom; far under v5e/v6e's 128 MiB


def _lane_pad_channels(C, W):
    """Smallest Cp >= C such that W*Cp is a multiple of 128 (lane-dense rows)."""
    for cp in range(C, C + 129):
        if (W * cp) % 128 == 0:
            return cp
    return C   # unreachable in practice; accept lane-sparse rows


def _band_weights(w_hwio, W, cin_p, cout_p):
    """(3,3,Cin,Cout) HWIO weights -> (3, W*cin_p, W*cout_p) banded matrices.

    B[kh][w_in*cin_p + ci, w_out*cout_p + co] = w[kh, w_in - w_out + 1, ci, co]
    (zero outside the +/-1 band and for padded channels), so a 3x3 SAME conv on
    lane-dense (H, W*Cin) rows becomes three MXU matmuls:
        y[h] = x[h-1] @ B[0] + x[h] @ B[1] + x[h+1] @ B[2]
    with out-of-range rows contributing zero.  W-border zero padding is
    absorbed into the band structure (out-of-range taps never appear).
    """
    _, _, cin, cout = w_hwio.shape
    wp = jnp.pad(w_hwio.astype(jnp.float32),
                 ((0, 0), (0, 0), (0, cin_p - cin), (0, cout_p - cout)))
    bands = []
    for kh in range(3):
        b = sum(jnp.kron(jnp.eye(W, k=1 - kw, dtype=jnp.float32), wp[kh, kw])
                for kw in range(3))
        bands.append(b)
    return jnp.stack(bands)                      # (3, W*cin_p, W*cout_p)


def _make_conv_kernel(H, w_cout, fuse_bn_relu_prologue):
    """3x3 SAME conv on one whole image of lane-dense (H, W*Cin) rows.

    Emits the conv result as lane-dense (H, W*Cout) rows plus per-image
    (sum, sum-of-squares) partials for the following BatchNorm.  If
    fuse_bn_relu_prologue, the input rows are first mapped through
    y -> relu(y*scale + shift), i.e. the previous layer's BN+ReLU (so that
    activation never round-trips through HBM).
    """

    def kernel(*refs):
        if fuse_bn_relu_prologue:
            x_ref, b_ref, sc_ref, sh_ref, y_ref, st_ref = refs
        else:
            x_ref, b_ref, y_ref, st_ref = refs

        x = x_ref[0]                                       # (H, W*Cin) lane-dense
        if fuse_bn_relu_prologue:
            x = jnp.maximum(x * sc_ref[...] + sh_ref[...], 0.0)
        x = x.astype(_MXU_DTYPE)

        # Banded-weight conv: both matmul operands stay exactly in the
        # lane-dense layout already in VMEM -- no im2col relayout, and the
        # matmul N-dim is the lane-dense W*Cout instead of Cout.
        yc = jnp.dot(x, b_ref[1].astype(_MXU_DTYPE),
                     preferred_element_type=jnp.float32)   # centre row tap
        t0 = jnp.dot(x, b_ref[0].astype(_MXU_DTYPE),
                     preferred_element_type=jnp.float32)   # tap from row h-1
        t2 = jnp.dot(x, b_ref[2].astype(_MXU_DTYPE),
                     preferred_element_type=jnp.float32)   # tap from row h+1

        # Realign the +/-1 row taps; the inserted zero rows are the H-border
        # zero padding.  (pltpu.roll + mask would move this to the XLU slot.)
        zrow = jnp.zeros((1, w_cout), jnp.float32)
        y = (yc
             + jnp.concatenate([zrow, t0[:H - 1, :]], axis=0)
             + jnp.concatenate([t2[1:, :], zrow], axis=0))

        y_ref[0] = y
        # Fused BN statistics: reduce over the H sublanes here (lane-dense);
        # the tiny (w, channel) -> channel fold happens in the wrapper.
        st_ref[0] = jnp.concatenate(
            [jnp.sum(y, axis=0, keepdims=True),
             jnp.sum(y * y, axis=0, keepdims=True)], axis=0)

    return kernel


def conv3x3_bn_stats(x_rows, bands, scale_row=None, shift_row=None,
                     *, H, W, cin_p, cout_p):
    """x_rows (N, H, W*cin_p) -> (y (N, H, W*cout_p), stats (N, 2, W*cout_p))."""
    N = x_rows.shape[0]
    w_cin, w_cout = W * cin_p, W * cout_p
    fuse = scale_row is not None

    x_spec = pl.BlockSpec((1, H, w_cin), lambda n: (n, 0, 0))
    b_spec = pl.BlockSpec((3, w_cin, w_cout), lambda n: (0, 0, 0))
    row_spec = pl.BlockSpec((1, w_cin), lambda n: (0, 0))
    y_spec = pl.BlockSpec((1, H, w_cout), lambda n: (n, 0, 0))
    st_spec = pl.BlockSpec((1, 2, w_cout), lambda n: (n, 0, 0))

    in_specs = [x_spec, b_spec]
    args = [x_rows, bands]
    if fuse:
        in_specs += [row_spec, row_spec]
        args += [scale_row, shift_row]

    # Trace-time VMEM footprint check (x2 for Pallas double buffering).
    blk_bytes = 4 * (H * w_cin + 3 * w_cin * w_cout + H * w_cout + 2 * w_cout
                     + (2 * w_cin if fuse else 0))
    assert 2 * blk_bytes <= _VMEM_LIMIT, (
        f"per-step VMEM footprint {2 * blk_bytes} B exceeds {_VMEM_LIMIT} B; "
        "this shape needs the row-tiled path")
    # TODO(synk): for large H/W (real UNet feature maps) switch to row tiles
    # with single-row manual halo DMA and a dense (9*Cin, Cout) weight; the
    # banded formulation is only meant for small W.

    flops = 2 * N * 3 * H * w_cin * w_cout          # what the MXU actually does
    bytes_accessed = 4 * (N * H * (w_cin + w_cout) + 3 * w_cin * w_cout
                          + N * 2 * w_cout + (2 * w_cin if fuse else 0))

    return pl.pallas_call(
        _make_conv_kernel(H, w_cout, fuse),
        grid=(N,),                                  # whole image per step;
        in_specs=in_specs,                          # N=2 keeps both v7x cores busy
        out_specs=(y_spec, st_spec),
        out_shape=(
            jax.ShapeDtypeStruct((N, H, w_cout), jnp.float32),
            jax.ShapeDtypeStruct((N, 2, w_cout), jnp.float32),
        ),
        compiler_params=pltpu.CompilerParams(
            dimension_semantics=("parallel",),
            vmem_limit_bytes=_VMEM_LIMIT),
        cost_estimate=pl.CostEstimate(flops=flops, transcendentals=0,
                                      bytes_accessed=bytes_accessed),
    )(*args)


def _bn_relu_kernel(y_ref, sc_ref, sh_ref, o_ref):
    o_ref[0] = jnp.maximum(y_ref[0] * sc_ref[...] + sh_ref[...], 0.0)


def bn_relu_apply(y_rows, scale_row, shift_row, *, H, WC):
    """Elementwise y*scale + shift, ReLU on lane-dense (N, H, W*C) rows."""
    N = y_rows.shape[0]
    blk = pl.BlockSpec((1, H, WC), lambda n: (n, 0, 0))
    row = pl.BlockSpec((1, WC), lambda n: (0, 0))
    assert 2 * 4 * (2 * H * WC + 2 * WC) <= _VMEM_LIMIT
    return pl.pallas_call(
        _bn_relu_kernel,
        grid=(N,),
        in_specs=[blk, row, row],
        out_specs=blk,
        out_shape=jax.ShapeDtypeStruct((N, H, WC), jnp.float32),
        compiler_params=pltpu.CompilerParams(
            dimension_semantics=("parallel",),
            vmem_limit_bytes=_VMEM_LIMIT),
        cost_estimate=pl.CostEstimate(flops=2 * N * H * WC, transcendentals=0,
                                      bytes_accessed=4 * (2 * N * H * WC + 2 * WC)),
    )(y_rows, scale_row, shift_row)


def _bn_scale_shift(stats, gamma_p, beta_p, W, c_p, count):
    """Fold per-image (sum, sumsq) partials into per-channel BN scale/shift rows."""
    s = stats.sum(axis=0).reshape(2, W, c_p).sum(axis=1)       # (2, c_p) -- tiny
    mean = s[0] / count
    # Clamp guards the E[x^2]-E[x]^2 cancellation (review correctness note).
    var = jnp.maximum(s[1] / count - mean * mean, 0.0)          # biased variance
    scale = gamma_p * lax.rsqrt(var + EPS)
    shift = beta_p - mean * scale
    # Broadcast per-channel params into the lane-dense (1, W*c_p) row layout.
    return jnp.tile(scale, W)[None, :], jnp.tile(shift, W)[None, :]


def double_conv_nhwc(x_nhwc, params):
    """Transpose-free core: lane-dense (N, H, W*C) rows end-to-end."""
    N, H, W, Cin = x_nhwc.shape
    Cmid = params["w1"].shape[-1]
    Cout = params["w2"].shape[-1]
    cin_p = _lane_pad_channels(Cin, W)
    cmid_p = _lane_pad_channels(Cmid, W)
    cout_p = _lane_pad_channels(Cout, W)
    count = N * H * W

    # Channel-pad once so every activation row is a multiple of 128 lanes
    # (padded channels stay exactly zero through both convs and both BNs).
    if cin_p != Cin:
        x_nhwc = jnp.pad(x_nhwc, ((0, 0), (0, 0), (0, 0), (0, cin_p - Cin)))
    x_rows = x_nhwc.reshape(N, H, W * cin_p)

    b1 = _band_weights(params["w1"], W, cin_p, cmid_p)
    b2 = _band_weights(params["w2"], W, cmid_p, cout_p)
    g1 = jnp.pad(params["g1"], (0, cmid_p - Cmid))
    bt1 = jnp.pad(params["bt1"], (0, cmid_p - Cmid))
    g2 = jnp.pad(params["g2"], (0, cout_p - Cout))
    bt2 = jnp.pad(params["bt2"], (0, cout_p - Cout))

    # Conv1 + fused BN1 statistics.  Conv bias is dropped: training-mode BN's
    # mean subtraction cancels it exactly, so the forward output is unchanged.
    y1, st1 = conv3x3_bn_stats(x_rows, b1, H=H, W=W, cin_p=cin_p, cout_p=cmid_p)
    sc1, sh1 = _bn_scale_shift(st1, g1, bt1, W, cmid_p, count)

    # Conv2 with BN1+ReLU fused as its input prologue (the post-BN activation
    # never round-trips through HBM) + fused BN2 statistics.
    y2, st2 = conv3x3_bn_stats(y1, b2, sc1, sh1,
                               H=H, W=W, cin_p=cmid_p, cout_p=cout_p)
    sc2, sh2 = _bn_scale_shift(st2, g2, bt2, W, cout_p, count)

    out_rows = bn_relu_apply(y2, sc2, sh2, H=H, WC=W * cout_p)
    return out_rows.reshape(N, H, W, cout_p)[..., :Cout]


@jax.jit
def double_conv(x_nchw, params):
    """NCHW compatibility shim (matches the PyTorch module interface) around the
    transpose-free NHWC core; callers that can keep activations NHWC should use
    double_conv_nhwc directly and skip both wrapper layout passes."""
    out = double_conv_nhwc(jnp.transpose(x_nchw, (0, 2, 3, 1)), params)
    return jnp.transpose(out, (0, 3, 1, 2))


def double_conv_ref(x_nchw, p):
    # Pure-JAX reference of the PyTorch module (conv WITH bias; BN cancels it).
    x = jnp.transpose(x_nchw, (0, 2, 3, 1))

    def conv(z, w, b):
        y = lax.conv_general_dilated(z, w, (1, 1), "SAME",
                                     dimension_numbers=("NHWC", "HWIO", "NHWC"))
        return y + b

    def bnrelu(y, g, bt):
        mean = jnp.mean(y, axis=(0, 1, 2), keepdims=True)
        var = jnp.mean(jnp.square(y - mean), axis=(0, 1, 2), keepdims=True)
        return jnp.maximum((y - mean) * lax.rsqrt(var + EPS) * g + bt, 0.0)

    y = bnrelu(conv(x, p["w1"], p["b1"]), p["g1"], p["bt1"])
    y = bnrelu(conv(y, p["w2"], p["b2"]), p["g2"], p["bt2"])
    return jnp.transpose(y, (0, 3, 1, 2))


if __name__ == "__main__":
    key = jax.random.PRNGKey(0)
    in_c, out_c = 4, 8
    N, H, W = 2, 16, 16

    k1, k2, k3, k4, kx = jax.random.split(key, 5)
    # Deterministic PyTorch-style uniform init (bound = 1/sqrt(fan_in)).
    bound1 = 1.0 / (in_c * 9) ** 0.5
    bound2 = 1.0 / (out_c * 9) ** 0.5
    params = dict(
        w1=jax.random.uniform(k1, (3, 3, in_c, out_c), jnp.float32, -bound1, bound1),
        b1=jax.random.uniform(k2, (out_c,), jnp.float32, -bound1, bound1),
        g1=jnp.ones((out_c,), jnp.float32),
        bt1=jnp.zeros((out_c,), jnp.float32),
        w2=jax.random.uniform(k3, (3, 3, out_c, out_c), jnp.float32, -bound2, bound2),
        b2=jax.random.uniform(k4, (out_c,), jnp.float32, -bound2, bound2),
        g2=jnp.ones((out_c,), jnp.float32),
        bt2=jnp.zeros((out_c,), jnp.float32),
    )

    x = jax.random.normal(kx, (N, in_c, H, W), jnp.float32)

    out = jax.block_until_ready(double_conv(x, params))
    ref = double_conv_ref(x, params)

    assert out.shape == (N, out_c, H, W)
    if not jnp.allclose(out, ref, atol=1e-3, rtol=1e-3):
        raise AssertionError("Pallas DoubleConv output mismatch vs reference")
    print("KERNEL_OK")
</pallas_src>

<mosaic_0001>
module attributes {stable_mosaic.version = 11 : i64} {
  func.func @kernel(%arg0: i32, %arg1: memref<1x16x128xf32, #tpu.memory_space<vmem>>, %arg2: memref<3x128x128xf32, #tpu.memory_space<vmem>>, %arg3: memref<1x16x128xf32, #tpu.memory_space<vmem>>, %arg4: memref<1x2x128xf32, #tpu.memory_space<vmem>>) attributes {dimension_semantics = [#tpu.dimension_semantics<parallel>], iteration_bounds = array<i64: 2>, scalar_prefetch = 0 : i64, scratch_operands = 0 : i64, tpu.core_type = #tpu.core_type<tc>, window_params = [{transform_indices = @transform_0, window_bounds = array<i64: 1, 16, 128>}, {pipeline_mode = #tpu.pipeline_mode<synchronous>, transform_indices = @transform_1, window_bounds = array<i64: 3, 128, 128>}, {transform_indices = @transform_2, window_bounds = array<i64: 1, 16, 128>}, {transform_indices = @transform_3, window_bounds = array<i64: 1, 2, 128>}]} {
    %c0 = arith.constant 0 : index
    %c0_0 = arith.constant 0 : index
    %c0_1 = arith.constant 0 : index
    %0 = vector.load %arg1[%c0, %c0_0, %c0_1] : memref<1x16x128xf32, #tpu.memory_space<vmem>>, vector<1x16x128xf32>
    %1 = vector.shape_cast %0 : vector<1x16x128xf32> to vector<16x128xf32>
    %c1 = arith.constant 1 : index
    %c0_2 = arith.constant 0 : index
    %c0_3 = arith.constant 0 : index
    %2 = vector.load %arg2[%c1, %c0_2, %c0_3] : memref<3x128x128xf32, #tpu.memory_space<vmem>>, vector<1x128x128xf32>
    %3 = vector.shape_cast %2 : vector<1x128x128xf32> to vector<128x128xf32>
    %cst = arith.constant dense<0.000000e+00> : vector<16x128xf32>
    %4 = tpu.matmul %1, %3, %cst {dimension_numbers = #tpu.dot_dimension_numbers<[1], [0], [0], [1], [0, 0, 1, 1], [], []>} : vector<16x128xf32>, vector<128x128xf32>, vector<16x128xf32> -> vector<16x128xf32>
    %c0_4 = arith.constant 0 : index
    %c0_5 = arith.constant 0 : index
    %c0_6 = arith.constant 0 : index
    %5 = vector.load %arg2[%c0_4, %c0_5, %c0_6] : memref<3x128x128xf32, #tpu.memory_space<vmem>>, vector<1x128x128xf32>
    %6 = vector.shape_cast %5 : vector<1x128x128xf32> to vector<128x128xf32>
    %cst_7 = arith.constant dense<0.000000e+00> : vector<16x128xf32>
    %7 = tpu.matmul %1, %6, %cst_7 {dimension_numbers = #tpu.dot_dimension_numbers<[1], [0], [0], [1], [0, 0, 1, 1], [], []>} : vector<16x128xf32>, vector<128x128xf32>, vector<16x128xf32> -> vector<16x128xf32>
    %c2 = arith.constant 2 : index
    %c0_8 = arith.constant 0 : index
    %c0_9 = arith.constant 0 : index
    %8 = vector.load %arg2[%c2, %c0_8, %c0_9] : memref<3x128x128xf32, #tpu.memory_space<vmem>>, vector<1x128x128xf32>
    %9 = vector.shape_cast %8 : vector<1x128x128xf32> to vector<128x128xf32>
    %cst_10 = arith.constant dense<0.000000e+00> : vector<16x128xf32>
    %10 = tpu.matmul %1, %9, %cst_10 {dimension_numbers = #tpu.dot_dimension_numbers<[1], [0], [0], [1], [0, 0, 1, 1], [], []>} : vector<16x128xf32>, vector<128x128xf32>, vector<16x128xf32> -> vector<16x128xf32>
    %cst_11 = arith.constant 0.000000e+00 : f32
    %11 = vector.broadcast %cst_11 : f32 to vector<1x128xf32>
    %12 = vector.extract_strided_slice %7 {offsets = [0, 0], sizes = [15, 128], strides = [1, 1]} : vector<16x128xf32> to vector<15x128xf32>
    %13 = tpu.concatenate %11, %12 in 0 : vector<1x128xf32>, vector<15x128xf32> -> vector<16x128xf32>
    %14 = arith.addf %4, %13 : vector<16x128xf32>
    %15 = vector.extract_strided_slice %10 {offsets = [1, 0], sizes = [15, 128], strides = [1, 1]} : vector<16x128xf32> to vector<15x128xf32>
    %16 = tpu.concatenate %15, %11 in 0 : vector<15x128xf32>, vector<1x128xf32> -> vector<16x128xf32>
    %17 = arith.addf %14, %16 : vector<16x128xf32>
    %c0_12 = arith.constant 0 : index
    %c0_13 = arith.constant 0 : index
    %c0_14 = arith.constant 0 : index
    %18 = vector.load %arg3[%c0_12, %c0_13, %c0_14] : memref<1x16x128xf32, #tpu.memory_space<vmem>>, vector<1x16x128xf32>
    %19 = vector.shape_cast %18 : vector<1x16x128xf32> to vector<16x128xf32>
    %20 = vector.shape_cast %17 : vector<16x128xf32> to vector<1x16x128xf32>
    tpu.vector_store %arg3[%c0_12, %c0_13, %c0_14], %20 {strides = array<i32>} : memref<1x16x128xf32, #tpu.memory_space<vmem>>, vector<1x16x128xf32>,
    %cst_15 = arith.constant dense<0.000000e+00> : vector<128xf32>
    %21 = vector.multi_reduction <add>, %17, %cst_15 [0] : vector<16x128xf32> to vector<128xf32>
    %22 = vector.shape_cast %21 : vector<128xf32> to vector<1x128xf32>
    %23 = arith.mulf %17, %17 : vector<16x128xf32>
    %cst_16 = arith.constant dense<0.000000e+00> : vector<128xf32>
    %24 = vector.multi_reduction <add>, %23, %cst_16 [0] : vector<16x128xf32> to vector<128xf32>
    %25 = vector.shape_cast %24 : vector<128xf32> to vector<1x128xf32>
    %26 = tpu.concatenate %22, %25 in 0 : vector<1x128xf32>, vector<1x128xf32> -> vector<2x128xf32>
    %c0_17 = arith.constant 0 : index
    %c0_18 = arith.constant 0 : index
    %c0_19 = arith.constant 0 : index
    %27 = vector.load %arg4[%c0_17, %c0_18, %c0_19] : memref<1x2x128xf32, #tpu.memory_space<vmem>>, vector<1x2x128xf32>
    %28 = vector.shape_cast %27 : vector<1x2x128xf32> to vector<2x128xf32>
    %29 = vector.shape_cast %26 : vector<2x128xf32> to vector<1x2x128xf32>
    tpu.vector_store %arg4[%c0_17, %c0_18, %c0_19], %29 {strides = array<i32>} : memref<1x2x128xf32, #tpu.memory_space<vmem>>, vector<1x2x128xf32>,
    return
  }
  func.func @transform_0(%arg0: i32) -> (i32, i32, i32) {
    %c0_i32 = arith.constant 0 : i32
    %c0_i32_0 = arith.constant 0 : i32
    %c0_i32_1 = arith.constant 0 : i32
    return %arg0, %c0_i32, %c0_i32_0 : i32, i32, i32
  }
  func.func @transform_1(%arg0: i32) -> (i32, i32, i32) {
    %c0_i32 = arith.constant 0 : i32
    %c0_i32_0 = arith.constant 0 : i32
    %c0_i32_1 = arith.constant 0 : i32
    %c0_i32_2 = arith.constant 0 : i32
    return %c0_i32, %c0_i32_0, %c0_i32_1 : i32, i32, i32
  }
  func.func @transform_2(%arg0: i32) -> (i32, i32, i32) {
    %c0_i32 = arith.constant 0 : i32
    %c0_i32_0 = arith.constant 0 : i32
    %c0_i32_1 = arith.constant 0 : i32
    return %arg0, %c0_i32, %c0_i32_0 : i32, i32, i32
  }
  func.func @transform_3(%arg0: i32) -> (i32, i32, i32) {
    %c0_i32 = arith.constant 0 : i32
    %c0_i32_0 = arith.constant 0 : i32
    %c0_i32_1 = arith.constant 0 : i32
    return %arg0, %c0_i32, %c0_i32_0 : i32, i32, i32
  }
}

module attributes {stable_mosaic.version = 11 : i64} {
  func.func @_bn_relu_kernel(%arg0: i32, %arg1: memref<1x16x128xf32, #tpu.memory_space<vmem>>, %arg2: memref<1x128xf32, #tpu.memory_space<vmem>>, %arg3: memref<1x128xf32, #tpu.memory_space<vmem>>, %arg4: memref<1x16x128xf32, #tpu.memory_space<vmem>>) attributes {dimension_semantics = [#tpu.dimension_semantics<parallel>], iteration_bounds = array<i64: 2>, scalar_prefetch = 0 : i64, scratch_operands = 0 : i64, tpu.core_type = #tpu.core_type<tc>, window_params = [{transform_indices = @transform_0, window_bounds = array<i64: 1, 16, 128>}, {pipeline_mode = #tpu.pipeline_mode<synchronous>, transform_indices = @transform_1, window_bounds = array<i64: 1, 128>}, {pipeline_mode = #tpu.pipeline_mode<synchronous>, transform_indices = @transform_2, window_bounds = array<i64: 1, 128>}, {transform_indices = @transform_3, window_bounds = array<i64: 1, 16, 128>}]} {
    %c0 = arith.constant 0 : index
    %c0_0 = arith.constant 0 : index
    %c0_1 = arith.constant 0 : index
    %0 = vector.load %arg1[%c0, %c0_0, %c0_1] : memref<1x16x128xf32, #tpu.memory_space<vmem>>, vector<1x16x128xf32>
    %1 = vector.shape_cast %0 : vector<1x16x128xf32> to vector<16x128xf32>
    %c0_2 = arith.constant 0 : index
    %c0_3 = arith.constant 0 : index
    %2 = vector.load %arg2[%c0_2, %c0_3] : memref<1x128xf32, #tpu.memory_space<vmem>>, vector<1x128xf32>
    %3 = vector.broadcast %2 : vector<1x128xf32> to vector<16x128xf32>
    %4 = arith.mulf %1, %3 : vector<16x128xf32>
    %c0_4 = arith.constant 0 : index
    %c0_5 = arith.constant 0 : index
    %5 = vector.load %arg3[%c0_4, %c0_5] : memref<1x128xf32, #tpu.memory_space<vmem>>, vector<1x128xf32>
    %6 = vector.broadcast %5 : vector<1x128xf32> to vector<16x128xf32>
    %7 = arith.addf %4, %6 : vector<16x128xf32>
    %cst = arith.constant 0.000000e+00 : f32
    %8 = vector.broadcast %cst : f32 to vector<16x128xf32>
    %9 = arith.maximumf %7, %8 : vector<16x128xf32>
    %c0_6 = arith.constant 0 : index
    %c0_7 = arith.constant 0 : index
    %c0_8 = arith.constant 0 : index
    %10 = vector.load %arg4[%c0_6, %c0_7, %c0_8] : memref<1x16x128xf32, #tpu.memory_space<vmem>>, vector<1x16x128xf32>
    %11 = vector.shape_cast %10 : vector<1x16x128xf32> to vector<16x128xf32>
    %12 = vector.shape_cast %9 : vector<16x128xf32> to vector<1x16x128xf32>
    tpu.vector_store %arg4[%c0_6, %c0_7, %c0_8], %12 {strides = array<i32>} : memref<1x16x128xf32, #tpu.memory_space<vmem>>, vector<1x16x128xf32>,
    return
  }
  func.func @transform_0(%arg0: i32) -> (i32, i32, i32) {
    %c0_i32 = arith.constant 0 : i32
    %c0_i32_0 = arith.constant 0 : i32
    %c0_i32_1 = arith.constant 0 : i32
    return %arg0, %c0_i32, %c0_i32_0 : i32, i32, i32
  }
  func.func @transform_1(%arg0: i32) -> (i32, i32) {
    %c0_i32 = arith.constant 0 : i32
    %c0_i32_0 = arith.constant 0 : i32
    %c0_i32_1 = arith.constant 0 : i32
    return %c0_i32, %c0_i32_0 : i32, i32
  }
  func.func @transform_2(%arg0: i32) -> (i32, i32) {
    %c0_i32 = arith.constant 0 : i32
    %c0_i32_0 = arith.constant 0 : i32
    %c0_i32_1 = arith.constant 0 : i32
    return %c0_i32, %c0_i32_0 : i32, i32
  }
  func.func @transform_3(%arg0: i32) -> (i32, i32, i32) {
    %c0_i32 = arith.constant 0 : i32
    %c0_i32_0 = arith.constant 0 : i32
    %c0_i32_1 = arith.constant 0 : i32
    return %arg0, %c0_i32, %c0_i32_0 : i32, i32, i32
  }
}

module attributes {stable_mosaic.version = 11 : i64} {
  func.func @kernel(%arg0: i32, %arg1: memref<1x16x128xf32, #tpu.memory_space<vmem>>, %arg2: memref<3x128x128xf32, #tpu.memory_space<vmem>>, %arg3: memref<1x128xf32, #tpu.memory_space<vmem>>, %arg4: memref<1x128xf32, #tpu.memory_space<vmem>>, %arg5: memref<1x16x128xf32, #tpu.memory_space<vmem>>, %arg6: memref<1x2x128xf32, #tpu.memory_space<vmem>>) attributes {dimension_semantics = [#tpu.dimension_semantics<parallel>], iteration_bounds = array<i64: 2>, scalar_prefetch = 0 : i64, scratch_operands = 0 : i64, tpu.core_type = #tpu.core_type<tc>, window_params = [{transform_indices = @transform_0, window_bounds = array<i64: 1, 16, 128>}, {pipeline_mode = #tpu.pipeline_mode<synchronous>, transform_indices = @transform_1, window_bounds = array<i64: 3, 128, 128>}, {pipeline_mode = #tpu.pipeline_mode<synchronous>, transform_indices = @transform_2, window_bounds = array<i64: 1, 128>}, {pipeline_mode = #tpu.pipeline_mode<synchronous>, transform_indices = @transform_3, window_bounds = array<i64: 1, 128>}, {transform_indices = @transform_4, window_bounds = array<i64: 1, 16, 128>}, {transform_indices = @transform_5, window_bounds = array<i64: 1, 2, 128>}]} {
    %c0 = arith.constant 0 : index
    %c0_0 = arith.constant 0 : index
    %c0_1 = arith.constant 0 : index
    %0 = vector.load %arg1[%c0, %c0_0, %c0_1] : memref<1x16x128xf32, #tpu.memory_space<vmem>>, vector<1x16x128xf32>
    %1 = vector.shape_cast %0 : vector<1x16x128xf32> to vector<16x128xf32>
    %c0_2 = arith.constant 0 : index
    %c0_3 = arith.constant 0 : index
    %2 = vector.load %arg3[%c0_2, %c0_3] : memref<1x128xf32, #tpu.memory_space<vmem>>, vector<1x128xf32>
    %3 = vector.broadcast %2 : vector<1x128xf32> to vector<16x128xf32>
    %4 = arith.mulf %1, %3 : vector<16x128xf32>
    %c0_4 = arith.constant 0 : index
    %c0_5 = arith.constant 0 : index
    %5 = vector.load %arg4[%c0_4, %c0_5] : memref<1x128xf32, #tpu.memory_space<vmem>>, vector<1x128xf32>
    %6 = vector.broadcast %5 : vector<1x128xf32> to vector<16x128xf32>
    %7 = arith.addf %4, %6 : vector<16x128xf32>
    %cst = arith.constant 0.000000e+00 : f32
    %8 = vector.broadcast %cst : f32 to vector<16x128xf32>
    %9 = arith.maximumf %7, %8 : vector<16x128xf32>
    %c1 = arith.constant 1 : index
    %c0_6 = arith.constant 0 : index
    %c0_7 = arith.constant 0 : index
    %10 = vector.load %arg2[%c1, %c0_6, %c0_7] : memref<3x128x128xf32, #tpu.memory_space<vmem>>, vector<1x128x128xf32>
    %11 = vector.shape_cast %10 : vector<1x128x128xf32> to vector<128x128xf32>
    %cst_8 = arith.constant dense<0.000000e+00> : vector<16x128xf32>
    %12 = tpu.matmul %9, %11, %cst_8 {dimension_numbers = #tpu.dot_dimension_numbers<[1], [0], [0], [1], [0, 0, 1, 1], [], []>} : vector<16x128xf32>, vector<128x128xf32>, vector<16x128xf32> -> vector<16x128xf32>
    %c0_9 = arith.constant 0 : index
    %c0_10 = arith.constant 0 : index
    %c0_11 = arith.constant 0 : index
    %13 = vector.load %arg2[%c0_9, %c0_10, %c0_11] : memref<3x128x128xf32, #tpu.memory_space<vmem>>, vector<1x128x128xf32>
    %14 = vector.shape_cast %13 : vector<1x128x128xf32> to vector<128x128xf32>
    %cst_12 = arith.constant dense<0.000000e+00> : vector<16x128xf32>
    %15 = tpu.matmul %9, %14, %cst_12 {dimension_numbers = #tpu.dot_dimension_numbers<[1], [0], [0], [1], [0, 0, 1, 1], [], []>} : vector<16x128xf32>, vector<128x128xf32>, vector<16x128xf32> -> vector<16x128xf32>
    %c2 = arith.constant 2 : index
    %c0_13 = arith.constant 0 : index
    %c0_14 = arith.constant 0 : index
    %16 = vector.load %arg2[%c2, %c0_13, %c0_14] : memref<3x128x128xf32, #tpu.memory_space<vmem>>, vector<1x128x128xf32>
    %17 = vector.shape_cast %16 : vector<1x128x128xf32> to vector<128x128xf32>
    %cst_15 = arith.constant dense<0.000000e+00> : vector<16x128xf32>
    %18 = tpu.matmul %9, %17, %cst_15 {dimension_numbers = #tpu.dot_dimension_numbers<[1], [0], [0], [1], [0, 0, 1, 1], [], []>} : vector<16x128xf32>, vector<128x128xf32>, vector<16x128xf32> -> vector<16x128xf32>
    %cst_16 = arith.constant 0.000000e+00 : f32
    %19 = vector.broadcast %cst_16 : f32 to vector<1x128xf32>
    %20 = vector.extract_strided_slice %15 {offsets = [0, 0], sizes = [15, 128], strides = [1, 1]} : vector<16x128xf32> to vector<15x128xf32>
    %21 = tpu.concatenate %19, %20 in 0 : vector<1x128xf32>, vector<15x128xf32> -> vector<16x128xf32>
    %22 = arith.addf %12, %21 : vector<16x128xf32>
    %23 = vector.extract_strided_slice %18 {offsets = [1, 0], sizes = [15, 128], strides = [1, 1]} : vector<16x128xf32> to vector<15x128xf32>
    %24 = tpu.concatenate %23, %19 in 0 : vector<15x128xf32>, vector<1x128xf32> -> vector<16x128xf32>
    %25 = arith.addf %22, %24 : vector<16x128xf32>
    %c0_17 = arith.constant 0 : index
    %c0_18 = arith.constant 0 : index
    %c0_19 = arith.constant 0 : index
    %26 = vector.load %arg5[%c0_17, %c0_18, %c0_19] : memref<1x16x128xf32, #tpu.memory_space<vmem>>, vector<1x16x128xf32>
    %27 = vector.shape_cast %26 : vector<1x16x128xf32> to vector<16x128xf32>
    %28 = vector.shape_cast %25 : vector<16x128xf32> to vector<1x16x128xf32>
    tpu.vector_store %arg5[%c0_17, %c0_18, %c0_19], %28 {strides = array<i32>} : memref<1x16x128xf32, #tpu.memory_space<vmem>>, vector<1x16x128xf32>,
    %cst_20 = arith.constant dense<0.000000e+00> : vector<128xf32>
    %29 = vector.multi_reduction <add>, %25, %cst_20 [0] : vector<16x128xf32> to vector<128xf32>
    %30 = vector.shape_cast %29 : vector<128xf32> to vector<1x128xf32>
    %31 = arith.mulf %25, %25 : vector<16x128xf32>
    %cst_21 = arith.constant dense<0.000000e+00> : vector<128xf32>
    %32 = vector.multi_reduction <add>, %31, %cst_21 [0] : vector<16x128xf32> to vector<128xf32>
    %33 = vector.shape_cast %32 : vector<128xf32> to vector<1x128xf32>
    %34 = tpu.concatenate %30, %33 in 0 : vector<1x128xf32>, vector<1x128xf32> -> vector<2x128xf32>
    %c0_22 = arith.constant 0 : index
    %c0_23 = arith.constant 0 : index
    %c0_24 = arith.constant 0 : index
    %35 = vector.load %arg6[%c0_22, %c0_23, %c0_24] : memref<1x2x128xf32, #tpu.memory_space<vmem>>, vector<1x2x128xf32>
    %36 = vector.shape_cast %35 : vector<1x2x128xf32> to vector<2x128xf32>
    %37 = vector.shape_cast %34 : vector<2x128xf32> to vector<1x2x128xf32>
    tpu.vector_store %arg6[%c0_22, %c0_23, %c0_24], %37 {strides = array<i32>} : memref<1x2x128xf32, #tpu.memory_space<vmem>>, vector<1x2x128xf32>,
    return
  }
  func.func @transform_0(%arg0: i32) -> (i32, i32, i32) {
    %c0_i32 = arith.constant 0 : i32
    %c0_i32_0 = arith.constant 0 : i32
    %c0_i32_1 = arith.constant 0 : i32
    return %arg0, %c0_i32, %c0_i32_0 : i32, i32, i32
  }
  func.func @transform_1(%arg0: i32) -> (i32, i32, i32) {
    %c0_i32 = arith.constant 0 : i32
    %c0_i32_0 = arith.constant 0 : i32
    %c0_i32_1 = arith.constant 0 : i32
    %c0_i32_2 = arith.constant 0 : i32
    return %c0_i32, %c0_i32_0, %c0_i32_1 : i32, i32, i32
  }
  func.func @transform_2(%arg0: i32) -> (i32, i32) {
    %c0_i32 = arith.constant 0 : i32
    %c0_i32_0 = arith.constant 0 : i32
    %c0_i32_1 = arith.constant 0 : i32
    return %c0_i32, %c0_i32_0 : i32, i32
  }
  func.func @transform_3(%arg0: i32) -> (i32, i32) {
    %c0_i32 = arith.constant 0 : i32
    %c0_i32_0 = arith.constant 0 : i32
    %c0_i32_1 = arith.constant 0 : i32
    return %c0_i32, %c0_i32_0 : i32, i32
  }
  func.func @transform_4(%arg0: i32) -> (i32, i32, i32) {
    %c0_i32 = arith.constant 0 : i32
    %c0_i32_0 = arith.constant 0 : i32
    %c0_i32_1 = arith.constant 0 : i32
    return %arg0, %c0_i32, %c0_i32_0 : i32, i32, i32
  }
  func.func @transform_5(%arg0: i32) -> (i32, i32, i32) {
    %c0_i32 = arith.constant 0 : i32
    %c0_i32_0 = arith.constant 0 : i32
    %c0_i32_1 = arith.constant 0 : i32
    return %arg0, %c0_i32, %c0_i32_0 : i32, i32, i32
  }
}

</mosaic_0001>

<llo_original>
// kernel: double_conv.3
$region0: #{double_conv.3}
  #allocation0 [shape = 'u32[]', space=smem, size = 0x4, offset = 0x4, fixed_abs, tag = 'smem constant byte address 0x4 - core index']
  #allocation1 [shape = 'u32[72,128]{1,0:T(1,128)}', space=vmem, size = 0x9000, scoped, tag = 'internal scratch']
  %s0 = inlined_call_operand.vmem [shape: f32[2,16,128], index: 0, kind: input, shape index: {}]
  %s1 = inlined_call_operand.vmem [shape: f32[3,128,128], index: 1, kind: input, shape index: {}]
  %s2 = inlined_call_operand.vmem [shape: f32[2,16,128], index: 2, kind: output, shape index: {0}]
  %s3 = inlined_call_operand.vmem [shape: f32[2,2,128], index: 3, kind: output, shape index: {1}]
  %4 = xla_tuple %s2, %s3
  %s5 = sld [smem:[#allocation0]]
  $region49: #{double_conv.3} parent=0
    _
  %s7 = ssub.s32 1, %s5
  %s8 = scalar_select 0, %s7, %s5
  loop: start=0, step=1, limit=4
  $region2: #{double_conv.3} parent=0 // loop_pre_header
    _
  $region3: #{double_conv.3} parent=0 // loop_header
    %s10 = sphi 0, %s14
    %p11 = scmp.ge.s32.totalorder %s10, 4
    %s20 = sphi 0, %s22
    %s23 = sphi 0, %s20
    %s24 = sphi 0, %s23
    %s40 = sphi 0, %s24
    %s44 = sphi 0, %s44
    %s46 = sphi 0, %s44
    %s47 = sphi 0, %s46
    %s61 = sphi 0, %s47
    %s67 = sphi 0, %s69
    %s70 = sphi 0, %s67
    %s71 = sphi 0, %s70
    %s87 = sphi 0, %s71
    %s93 = sphi 0, %s95
    %s96 = sphi 0, %s93
    %s97 = sphi 0, %s96
    %s113 = sphi 0, %s97
  $region4: #{double_conv.3} parent=0 // loop_header_branch
    %13 = sbr.rel (%p11) target = $region8
  $region5: #{double_conv.3} parent=0 // loop_body
    %s15 = ssub.s32 %s10, 1
    %s16 = ssub.s32 %s10, 2
    %s17 = sadd.s32 %s10, 1
    %s18 = ssub.s32 %s10, %s17
    %p19 = scmp.eq.s32.totalorder %s18, 0
    %s21 = sadd.s32 %s20, 1
    %s22 = scalar_select %p19, %s20, %s21
    %p25 = pneg %p19
    %p26 = scmp.eq.s32.totalorder %s10, 1
    %p27 = por %p25, %p26
    %p28 = scmp.ne.s32.totalorder %s20, %s23
    %p29 = scmp.eq.s32.totalorder %s10, 0
    %p30 = por %p28, %p29
    %p31 = scmp.ne.s32.totalorder %s20, %s23
    %p32 = scmp.eq.s32.totalorder %s15, 1
    %p33 = por %p31, %p32
    %p34 = scmp.ne.s32.totalorder %s23, %s24
    %p35 = scmp.eq.s32.totalorder %s15, 0
    %p36 = por %p34, %p35
    %p37 = scmp.ne.s32.totalorder %s23, %s24
    %p38 = scmp.eq.s32.totalorder %s16, 1
    %p39 = por %p37, %p38
    %p41 = scmp.ne.s32.totalorder %s24, %s40
    %p42 = scmp.eq.s32.totalorder %s16, 0
    %p43 = por %p41, %p42
    %s45 = sadd.s32 %s44, 1
    %p48 = scmp.eq.s32.totalorder %s10, 1
    %p49 = scmp.ne.s32.totalorder %s44, %s46
    %p50 = scmp.eq.s32.totalorder %s10, 0
    %p51 = por %p49, %p50
    %p52 = scmp.ne.s32.totalorder %s44, %s46
    %p53 = scmp.eq.s32.totalorder %s15, 1
    %p54 = por %p52, %p53
    %p55 = scmp.ne.s32.totalorder %s46, %s47
    %p56 = scmp.eq.s32.totalorder %s15, 0
    %p57 = por %p55, %p56
    %p58 = scmp.ne.s32.totalorder %s46, %s47
    %p59 = scmp.eq.s32.totalorder %s16, 1
    %p60 = por %p58, %p59
    %p62 = scmp.ne.s32.totalorder %s47, %s61
    %p63 = scmp.eq.s32.totalorder %s16, 0
    %p64 = por %p62, %p63
    %s65 = ssub.s32 %s10, %s17
    %p66 = scmp.eq.s32.totalorder %s65, 0
    %s68 = sadd.s32 %s67, 1
    %s69 = scalar_select %p66, %s67, %s68
    %p72 = pneg %p66
    %p73 = scmp.eq.s32.totalorder %s10, 1
    %p74 = por %p72, %p73
    %p75 = scmp.ne.s32.totalorder %s67, %s70
    %p76 = scmp.eq.s32.totalorder %s10, 0
    %p77 = por %p75, %p76
    %p78 = scmp.ne.s32.totalorder %s67, %s70
    %p79 = scmp.eq.s32.totalorder %s15, 1
    %p80 = por %p78, %p79
    %p81 = scmp.ne.s32.totalorder %s70, %s71
    %p82 = scmp.eq.s32.totalorder %s15, 0
    %p83 = por %p81, %p82
    %p84 = scmp.ne.s32.totalorder %s70, %s71
    %p85 = scmp.eq.s32.totalorder %s16, 1
    %p86 = por %p84, %p85
    %p88 = scmp.ne.s32.totalorder %s71, %s87
    %p89 = scmp.eq.s32.totalorder %s16, 0
    %p90 = por %p88, %p89
    %s91 = ssub.s32 %s10, %s17
    %p92 = scmp.eq.s32.totalorder %s91, 0
    %s94 = sadd.s32 %s93, 1
    %s95 = scalar_select %p92, %s93, %s94
    %p98 = pneg %p92
    %p99 = scmp.eq.s32.totalorder %s10, 1
    %p100 = por %p98, %p99
    %p101 = scmp.ne.s32.totalorder %s93, %s96
    %p102 = scmp.eq.s32.totalorder %s10, 0
    %p103 = por %p101, %p102
    %p104 = scmp.ne.s32.totalorder %s93, %s96
    %p105 = scmp.eq.s32.totalorder %s15, 1
    %p106 = por %p104, %p105
    %p107 = scmp.ne.s32.totalorder %s96, %s97
    %p108 = scmp.eq.s32.totalorder %s15, 0
    %p109 = por %p107, %p108
    %p110 = scmp.ne.s32.totalorder %s96, %s97
    %p111 = scmp.eq.s32.totalorder %s16, 1
    %p112 = por %p110, %p111
    %p114 = scmp.ne.s32.totalorder %s97, %s113
    %p115 = scmp.eq.s32.totalorder %s16, 0
    %p116 = por %p114, %p115
    %p117 = scmp.le.s32.totalorder 1, %s10
    %p118 = scmp.lt.s32.totalorder %s10, 3
    %p119 = pnand %p117, %p118
    %p120 = pneg %p119
    // Predicated region
    $region9: #{double_conv.3} parent=5 // pred_check
      _
    $region10: #{double_conv.3} parent=5 // pred_check_branch
      %122 = sbr.rel (%p119) target = $region12
    $region11: #{double_conv.3} parent=5 // pred_region
      %s123 = ssub.s32 %s10, 1
      // Predicated region
      $region13: #{double_conv.3} parent=11 // pred_check
        %p124 = pneg %p57
      $region14: #{double_conv.3} parent=11 // pred_check_branch
        %126 = sbr.rel (%p124) target = $region16
      $region15: #{double_conv.3} parent=11 // pred_region
        _
      $region16: #{double_conv.3} parent=11 // pred_fallthru
        _
    $region12: #{double_conv.3} parent=5 // pred_fallthru
      _
    %p127 = scmp.lt.s32.totalorder %s10, 2
    // Predicated region
    $region17: #{double_conv.3} parent=5 // pred_check
      %p128 = pneg %p127
    $region18: #{double_conv.3} parent=5 // pred_check_branch
      %130 = sbr.rel (%p128) target = $region20
    $region19: #{double_conv.3} parent=5 // pred_region
      // Predicated region
      $region21: #{double_conv.3} parent=19 // pred_check
        %p131 = pneg %p30
      $region22: #{double_conv.3} parent=19 // pred_check_branch
        %133 = sbr.rel (%p131) target = $region24
      $region23: #{double_conv.3} parent=19 // pred_region
        %p134 = scmp.lt.s32.totalorder %s10, 1
        %s135 = scalar_select %p134, %s10, 1
        %s136 = smul.addr %s135, 2
        %s137 = smul.addr %s136, 8
        %s138 = scalar_lea.vmem %s0, %s137
      $region24: #{double_conv.3} parent=19 // pred_fallthru
        _
    $region20: #{double_conv.3} parent=5 // pred_fallthru
      _
    %p139 = scmp.le.s32.totalorder 1, %s10
    %p140 = scmp.lt.s32.totalorder %s10, 3
    %p141 = pnand %p139, %p140
    %p142 = pneg %p141
    // Predicated region
    $region25: #{double_conv.3} parent=5 // pred_check
      _
    $region26: #{double_conv.3} parent=5 // pred_check_branch
      %144 = sbr.rel (%p141) target = $region28
    $region27: #{double_conv.3} parent=5 // pred_region
      %s145 = ssub.s32 %s10, 1
      %p146 = scmp.lt.s32.totalorder %s15, 1
      %s147 = scalar_select %p146, %s15, 1
      %s148 = smul.addr %s147, 2
      %s149 = smul.addr %s148, 8
      %s150 = scalar_lea.vmem %s0, %s149
      %p151 = pneg %p36
      %p152 = pneg %p33
      %p153 = pneg %p57
      %p154 = pneg %p54
      %p155 = pneg %p83
      %p156 = pneg %p80
      %p157 = scmp.lt.s32.totalorder %s15, 1
      %s158 = scalar_select %p157, %s15, 1
      %s159 = smul.addr %s158, 2
      %s160 = smul.addr %s159, 8
      %s161 = scalar_lea.vmem %s2, %s160
      %p162 = pneg %p109
      %p163 = pneg %p106
      %p164 = scmp.lt.s32.totalorder %s15, 1
      %s165 = scalar_select %p164, %s15, 1
      %s166 = smul.addr %s165, 2
      %s167 = scalar_lea.vmem %s3, %s166
      %p168 = scmp.lt.s32.totalorder %s15, 1
      %s169 = scalar_select %p168, %s15, 1
      %s170 = smul.addr %s169, 2
      %s171 = smul.addr %s170, 8
      %s172 = scalar_lea.vmem %s0, %s171
      %p173 = scmp.lt.s32.totalorder %s15, 1
      %s174 = scalar_select %p173, %s15, 1
      %s175 = smul.addr %s174, 2
      %s176 = smul.addr %s175, 8
      %s177 = scalar_lea.vmem %s2, %s176
      %p178 = scmp.lt.s32.totalorder %s15, 1
      %s179 = scalar_select %p178, %s15, 1
      %s180 = smul.addr %s179, 2
      %s181 = scalar_lea.vmem %s3, %s180
      %v182 = vld [vmem:[%s172] sm:$0xff]
      %v183 = vld [vmem:[%s172 + $0x8] sm:$0xff]
      %s184 = scalar_lea.vmem %s1, 128
      %v185 = vld [vmem:[%s184] sm:$0xff]
      %v186 = vld [vmem:[%s184 + $0x8] sm:$0xff]
      %v187 = vld [vmem:[%s184 + $0x10] sm:$0xff]
      %v188 = vld [vmem:[%s184 + $0x18] sm:$0xff]
      %v189 = vld [vmem:[%s184 + $0x20] sm:$0xff]
      %v190 = vld [vmem:[%s184 + $0x28] sm:$0xff]
      %v191 = vld [vmem:[%s184 + $0x30] sm:$0xff]
      %v192 = vld [vmem:[%s184 + $0x38] sm:$0xff]
      %v193 = vld [vmem:[%s184 + $0x40] sm:$0xff]
      %v194 = vld [vmem:[%s184 + $0x48] sm:$0xff]
      %v195 = vld [vmem:[%s184 + $0x50] sm:$0xff]
      %v196 = vld [vmem:[%s184 + $0x58] sm:$0xff]
      %v197 = vld [vmem:[%s184 + $0x60] sm:$0xff]
      %v198 = vld [vmem:[%s184 + $0x68] sm:$0xff]
      %v199 = vld [vmem:[%s184 + $0x70] sm:$0xff]
      %v200 = vld [vmem:[%s184 + $0x78] sm:$0xff]
      %v201 = vld [vmem:[%s1] sm:$0xff]
      %v202 = vld [vmem:[%s1 + $0x8] sm:$0xff]
      %v203 = vld [vmem:[%s1 + $0x10] sm:$0xff]
      %v204 = vld [vmem:[%s1 + $0x18] sm:$0xff]
      %v205 = vld [vmem:[%s1 + $0x20] sm:$0xff]
      %v206 = vld [vmem:[%s1 + $0x28] sm:$0xff]
      %v207 = vld [vmem:[%s1 + $0x30] sm:$0xff]
      %v208 = vld [vmem:[%s1 + $0x38] sm:$0xff]
      %v209 = vld [vmem:[%s1 + $0x40] sm:$0xff]
      %v210 = vld [vmem:[%s1 + $0x48] sm:$0xff]
      %v211 = vld [vmem:[%s1 + $0x50] sm:$0xff]
      %v212 = vld [vmem:[%s1 + $0x58] sm:$0xff]
      %v213 = vld [vmem:[%s1 + $0x60] sm:$0xff]
      %v214 = vld [vmem:[%s1 + $0x68] sm:$0xff]
      %v215 = vld [vmem:[%s1 + $0x70] sm:$0xff]
      %v216 = vld [vmem:[%s1 + $0x78] sm:$0xff]
      %217 = vmatpush.msra.mxu0 %v216
      %218 = vmatpush.msra.mxu0 %v215
      %219 = vmatpush.msra.mxu0 %v214
      %220 = vmatpush.msra.mxu0 %v213
      %221 = vmatpush.msra.mxu0 %v212
      %222 = vmatpush.msra.mxu0 %v211
      %223 = vmatpush.msra.mxu0 %v210
      %224 = vmatpush.msra.mxu0 %v209
      %225 = vmatpush.msra.mxu0 %v208
      %226 = vmatpush.msra.mxu0 %v207
      %227 = vmatpush.msra.mxu0 %v206
      %228 = vmatpush.msra.mxu0 %v205
      %229 = vmatpush.msra.mxu0 %v204
      %230 = vmatpush.msra.mxu0 %v203
      %231 = vmatpush.msra.mxu0 %v202
      %232 = vmatpush.msra.mxu0 %v201
      %233 = vmatmul.f32.gmra.mxu0 %v182
      %v234 = vpop.f32.mrf.mxu0
      %v235 = vadd.f32 0.0, %v234
      %236 = vmatmul.f32.gmra.mxu0 %v183
      %v237 = vpop.f32.mrf.mxu0
      %v238 = vadd.f32 0.0, %v237
      %239 = vdwg.mxu0
      %s240 = scalar_lea.vmem %s1, 256
      %v241 = vld [vmem:[%s240] sm:$0xff]
      %v242 = vld [vmem:[%s240 + $0x8] sm:$0xff]
      %v243 = vld [vmem:[%s240 + $0x10] sm:$0xff]
      %v244 = vld [vmem:[%s240 + $0x18] sm:$0xff]
      %v245 = vld [vmem:[%s240 + $0x20] sm:$0xff]
      %v246 = vld [vmem:[%s240 + $0x28] sm:$0xff]
      %v247 = vld [vmem:[%s240 + $0x30] sm:$0xff]
      %v248 = vld [vmem:[%s240 + $0x38] sm:$0xff]
      %v249 = vld [vmem:[%s240 + $0x40] sm:$0xff]
      %v250 = vld [vmem:[%s240 + $0x48] sm:$0xff]
      %v251 = vld [vmem:[%s240 + $0x50] sm:$0xff]
      %v252 = vld [vmem:[%s240 + $0x58] sm:$0xff]
      %v253 = vld [vmem:[%s240 + $0x60] sm:$0xff]
      %v254 = vld [vmem:[%s240 + $0x68] sm:$0xff]
      %v255 = vld [vmem:[%s240 + $0x70] sm:$0xff]
      %v256 = vld [vmem:[%s240 + $0x78] sm:$0xff]
      %257 = vmatpush.msra.mxu0 %v256
      %258 = vmatpush.msra.mxu0 %v255
      %259 = vmatpush.msra.mxu0 %v254
      %260 = vmatpush.msra.mxu0 %v253
      %261 = vmatpush.msra.mxu0 %v252
      %262 = vmatpush.msra.mxu0 %v251
      %263 = vmatpush.msra.mxu0 %v250
      %264 = vmatpush.msra.mxu0 %v249
      %265 = vmatpush.msra.mxu0 %v248
      %266 = vmatpush.msra.mxu0 %v247
      %267 = vmatpush.msra.mxu0 %v246
      %268 = vmatpush.msra.mxu0 %v245
      %269 = vmatpush.msra.mxu0 %v244
      %270 = vmatpush.msra.mxu0 %v243
      %271 = vmatpush.msra.mxu0 %v242
      %272 = vmatpush.msra.mxu0 %v241
      %273 = vmatmul.f32.gmra.mxu0 %v182
      %v274 = vpop.f32.mrf.mxu0
      %v275 = vadd.f32 0.0, %v274
      %276 = vmatmul.f32.gmra.mxu0 %v183
      %v277 = vpop.f32.mrf.mxu0
      %v278 = vadd.f32 0.0, %v277
      %279 = vdwg.mxu0
      %vm282 = vcmask 1040384
      %v283 = vrot.slane %v235, 7
      %v284 = vrot.slane %v238, 7
      %v285 = vsel %vm282, %v283, %v284
      %v288 = vsel %vm282, 0.0, %v283
      %289 = vmatpush.msra.mxu0 %v200
      %290 = vmatpush.msra.mxu0 %v199
      %291 = vmatpush.msra.mxu0 %v198
      %292 = vmatpush.msra.mxu0 %v197
      %293 = vmatpush.msra.mxu0 %v196
      %294 = vmatpush.msra.mxu0 %v195
      %295 = vmatpush.msra.mxu0 %v194
      %296 = vmatpush.msra.mxu0 %v193
      %297 = vmatpush.msra.mxu0 %v192
      %298 = vmatpush.msra.mxu0 %v191
      %299 = vmatpush.msra.mxu0 %v190
      %300 = vmatpush.msra.mxu0 %v189
      %301 = vmatpush.msra.mxu0 %v188
      %302 = vmatpush.msra.mxu0 %v187
      %303 = vmatpush.msra.mxu0 %v186
      %304 = vmatpush.msra.mxu0 %v185
      %305 = vmatmul.f32.gmra.mxu0 %v182
      %v306 = vpop.f32.mrf.mxu0
      %v307 = vadd.f32 %v288, %v306
      %308 = vmatmul.f32.gmra.mxu0 %v183
      %v309 = vpop.f32.mrf.mxu0
      %v310 = vadd.f32 %v285, %v309
      %311 = vdwg.mxu0
      %vm314 = vcmask 1046528
      %v315 = vrot.slane %v275, 1
      %v316 = vrot.slane %v278, 1
      %v317 = vsel %vm314, %v315, %v316
      %v320 = vsel %vm314, %v316, 0.0
      %v321 = vadd.f32 %v307, %v317
      %v322 = vadd.f32 %v310, %v320
      %323 = vst [vmem:[%s177] sm:$0xff] %v321
      %324 = vst [vmem:[%s177 + $0x8] sm:$0xff] %v322
      %v325 = vadd.f32 %v321, %v322
      %v326 = vrot.slane %v325, 4
      %v327 = vadd.f32 %v325, %v326
      %v328 = vrot.slane %v327, 2
      %v329 = vadd.f32 %v327, %v328
      %v330 = vrot.slane %v329, 1
      %v331 = vadd.f32 %v329, %v330
      %v332 = vmul.f32 %v321, %v321
      %v333 = vmul.f32 %v322, %v322
      %v334 = vadd.f32 %v332, %v333
      %v335 = vrot.slane %v334, 4
      %v336 = vadd.f32 %v334, %v335
      %v337 = vrot.slane %v336, 2
      %v338 = vadd.f32 %v336, %v337
      %v339 = vrot.slane %v338, 1
      %v340 = vadd.f32 %v338, %v339
      %v341 = vsel %vm282, %v331, %v340
      %342 = vst [vmem:[%s181] sm:$0x3] %v341
      %p343 = scmp.lt.s32.totalorder %s15, 1
      %s344 = scalar_select %p343, %s15, 1
      %s345 = smul.addr %s344, 2
      %s346 = smul.addr %s345, 8
      %s347 = scalar_lea.vmem %s2, %s346
      %p348 = scmp.lt.s32.totalorder %s15, 1
      %s349 = scalar_select %p348, %s15, 1
      %s350 = smul.addr %s349, 2
      %s351 = scalar_lea.vmem %s3, %s350
      // Predicated region
      $region29: #{double_conv.3} parent=27 // pred_check
        %p352 = pneg %p80
      $region30: #{double_conv.3} parent=27 // pred_check_branch
        %354 = sbr.rel (%p352) target = $region32
      $region31: #{double_conv.3} parent=27 // pred_region
        _
      $region32: #{double_conv.3} parent=27 // pred_fallthru
        _
      // Predicated region
      $region33: #{double_conv.3} parent=27 // pred_check
        %p355 = pneg %p106
      $region34: #{double_conv.3} parent=27 // pred_check_branch
        %357 = sbr.rel (%p355) target = $region36
      $region35: #{double_conv.3} parent=27 // pred_region
        _
      $region36: #{double_conv.3} parent=27 // pred_fallthru
        _
    $region28: #{double_conv.3} parent=5 // pred_fallthru
      _
    %p358 = scmp.le.s32.totalorder 2, %s10
    // Predicated region
    $region37: #{double_conv.3} parent=5 // pred_check
      %p359 = pneg %p358
    $region38: #{double_conv.3} parent=5 // pred_check_branch
      %361 = sbr.rel (%p359) target = $region40
    $region39: #{double_conv.3} parent=5 // pred_region
      %s362 = ssub.s32 %s10, 2
      // Predicated region
      $region41: #{double_conv.3} parent=39 // pred_check
        %p363 = pneg %p86
      $region42: #{double_conv.3} parent=39 // pred_check_branch
        %365 = sbr.rel (%p363) target = $region44
      $region43: #{double_conv.3} parent=39 // pred_region
        %p366 = scmp.lt.s32.totalorder %s16, 1
        %s367 = scalar_select %p366, %s16, 1
        %s368 = smul.addr %s367, 2
        %s369 = smul.addr %s368, 8
        %s370 = scalar_lea.vmem %s2, %s369
      $region44: #{double_conv.3} parent=39 // pred_fallthru
        _
      // Predicated region
      $region45: #{double_conv.3} parent=39 // pred_check
        %p371 = pneg %p112
      $region46: #{double_conv.3} parent=39 // pred_check_branch
        %373 = sbr.rel (%p371) target = $region48
      $region47: #{double_conv.3} parent=39 // pred_region
        %p374 = scmp.lt.s32.totalorder %s16, 1
        %s375 = scalar_select %p374, %s16, 1
        %s376 = smul.addr %s375, 2
        %s377 = scalar_lea.vmem %s3, %s376
      $region48: #{double_conv.3} parent=39 // pred_fallthru
        _
    $region40: #{double_conv.3} parent=5 // pred_fallthru
      _
  $region6: #{double_conv.3} parent=0 // loop_footer
    %s14 = sadd.s32 1, %s10
  $region7: #{double_conv.3} parent=0 // loop_footer_branch
    %9 = sbr.rel target = $region3
  $region8: #{double_conv.3} parent=0 // loop_exit
    _

// kernel: tile.23
$region0: #{tile.23}
  #allocation0 [shape = 's32[1]{0}', space=sflag, size = 0x4, scoped, tag = 'scoped memory for tile.23']
  %s0 = inlined_call_operand.vmem [shape: f32[8], index: 0, kind: input, shape index: {}]
  %s1 = inlined_call_operand.vmem [shape: f32[16,8], index: 1, kind: output, shape index: {}]
  // Predicated region
  $region2: #{tile.23} parent=0 // pred_check
    _
  $region3: #{tile.23} parent=0 // pred_check_branch
    %3 = sbr.rel (0) target = $region5
  $region4: #{tile.23} parent=0 // pred_region
    _
  $region5: #{tile.23} parent=0 // pred_fallthru
    _
  %v4 = vld [vmem:[%s0] ss:$0 sm:$0xff]
  %5 = vst [vmem:[%s1] sm:$0xff] %v4
  %s6 = scalar_lea.vmem %s1, 8
  %7 = vst [vmem:[%s6] sm:$0xff] %v4

// kernel: tile.24
$region0: #{tile.24}
  %s0 = inlined_call_operand.vmem [shape: f32[16,8], index: 0, kind: input, shape index: {}]
  %s1 = inlined_call_operand.vmem [shape: f32[1,128], index: 1, kind: output, shape index: {}]
  $region1: #{tile.24} parent=0
    #allocation0 [shape = 'u8[4096]{0}', space=vmem, size = 0x1000, scoped, tag = 'scoped mem for output reshape']
    %v2 = vld [vmem:[%s0] sm:$0x1]
    %vm3 = vcmask 64512
    %4 = vst.msk [vmem:[#allocation0] sm:$0x1] %vm3, %v2
    %s5 = scalar_lea.vmem %s0, 15
    %v6 = vld [vmem:[%s5] sm:$0x1]
    %7 = vrot.lane.b32.xlu0 %v6, 120
    %v8 = vpop.permute.xlu0 %7
    %vm9 = vcmask 1048512
    %10 = vst.msk [vmem:[#allocation0] sm:$0x1] %vm9, %v8
    %s11 = scalar_lea.vmem %s0, 14
    %v12 = vld [vmem:[%s11] sm:$0x1]
    %13 = vrot.lane.b32.xlu0 %v12, 112
    %v14 = vpop.permute.xlu0 %13
    %vm15 = vcmask 982912
    %16 = vst.msk [vmem:[#allocation0] sm:$0x1] %vm15, %v14
    %s17 = scalar_lea.vmem %s0, 13
    %v18 = vld [vmem:[%s17] sm:$0x1]
    %19 = vrot.lane.b32.xlu0 %v18, 104
    %v20 = vpop.permute.xlu0 %19
    %vm21 = vcmask 917312
    %22 = vst.msk [vmem:[#allocation0] sm:$0x1] %vm21, %v20
    %s23 = scalar_lea.vmem %s0, 12
    %v24 = vld [vmem:[%s23] sm:$0x1]
    %25 = vrot.lane.b32.xlu0 %v24, 96
    %v26 = vpop.permute.xlu0 %25
    %vm27 = vcmask 851712
    %28 = vst.msk [vmem:[#allocation0] sm:$0x1] %vm27, %v26
    %s29 = scalar_lea.vmem %s0, 11
    %v30 = vld [vmem:[%s29] sm:$0x1]
    %31 = vrot.lane.b32.xlu0 %v30, 88
    %v32 = vpop.permute.xlu0 %31
    %vm33 = vcmask 786112
    %34 = vst.msk [vmem:[#allocation0] sm:$0x1] %vm33, %v32
    %s35 = scalar_lea.vmem %s0, 10
    %v36 = vld [vmem:[%s35] sm:$0x1]
    %37 = vrot.lane.b32.xlu0 %v36, 80
    %v38 = vpop.permute.xlu0 %37
    %vm39 = vcmask 720512
    %40 = vst.msk [vmem:[#allocation0] sm:$0x1] %vm39, %v38
    %s41 = scalar_lea.vmem %s0, 9
    %v42 = vld [vmem:[%s41] sm:$0x1]
    %43 = vrot.lane.b32.xlu0 %v42, 72
    %v44 = vpop.permute.xlu0 %43
    %vm45 = vcmask 654912
    %46 = vst.msk [vmem:[#allocation0] sm:$0x1] %vm45, %v44
    %s47 = scalar_lea.vmem %s0, 8
    %v48 = vld [vmem:[%s47] sm:$0x1]
    %49 = vrot.lane.b32.xlu0 %v48, 64
    %v50 = vpop.permute.xlu0 %49
    %vm51 = vcmask 589312
    %52 = vst.msk [vmem:[#allocation0] sm:$0x1] %vm51, %v50
    %s53 = scalar_lea.vmem %s0, 7
    %v54 = vld [vmem:[%s53] sm:$0x1]
    %55 = vrot.lane.b32.xlu0 %v54, 56
    %v56 = vpop.permute.xlu0 %55
    %vm57 = vcmask 523712
    %58 = vst.msk [vmem:[#allocation0] sm:$0x1] %vm57, %v56
    %s59 = scalar_lea.vmem %s0, 6
    %v60 = vld [vmem:[%s59] sm:$0x1]
    %61 = vrot.lane.b32.xlu0 %v60, 48
    %v62 = vpop.permute.xlu0 %61
    %vm63 = vcmask 458112
    %64 = vst.msk [vmem:[#allocation0] sm:$0x1] %vm63, %v62
    %s65 = scalar_lea.vmem %s0, 5
    %v66 = vld [vmem:[%s65] sm:$0x1]
    %67 = vrot.lane.b32.xlu0 %v66, 40
    %v68 = vpop.permute.xlu0 %67
    %vm69 = vcmask 392512
    %70 = vst.msk [vmem:[#allocation0] sm:$0x1] %vm69, %v68
    %s71 = scalar_lea.vmem %s0, 4
    %v72 = vld [vmem:[%s71] sm:$0x1]
    %73 = vrot.lane.b32.xlu0 %v72, 32
    %v74 = vpop.permute.xlu0 %73
    %vm75 = vcmask 326912
    %76 = vst.msk [vmem:[#allocation0] sm:$0x1] %vm75, %v74
    %s77 = scalar_lea.vmem %s0, 3
    %v78 = vld [vmem:[%s77] sm:$0x1]
    %79 = vrot.lane.b32.xlu0 %v78, 24
    %v80 = vpop.permute.xlu0 %79
    %vm81 = vcmask 261312
    %82 = vst.msk [vmem:[#allocation0] sm:$0x1] %vm81, %v80
    %s83 = scalar_lea.vmem %s0, 2
    %v84 = vld [vmem:[%s83] sm:$0x1]
    %85 = vrot.lane.b32.xlu0 %v84, 16
    %v86 = vpop.permute.xlu0 %85
    %vm87 = vcmask 195712
    %88 = vst.msk [vmem:[#allocation0] sm:$0x1] %vm87, %v86
    %s89 = scalar_lea.vmem %s0, 1
    %v90 = vld [vmem:[%s89] sm:$0x1]
    %91 = vrot.lane.b32.xlu0 %v90, 8
    %v92 = vpop.permute.xlu0 %91
    %vm93 = vcmask 130112
    %94 = vst.msk [vmem:[#allocation0] sm:$0x1] %vm93, %v92
    %s96 = ssub.s32 2, 1
    %v97 = vld [vmem:[#allocation0] sm:%s96]
    %s99 = ssub.s32 2, 1
    %100 = vst [vmem:[%s1] sm:%s99] %v97

// kernel: double_conv.5
$region0: #{double_conv.5}
  #allocation0 [shape = 'u32[]', space=smem, size = 0x4, offset = 0x4, fixed_abs, tag = 'smem constant byte address 0x4 - core index']
  #allocation1 [shape = 'u32[72,128]{1,0:T(1,128)}', space=vmem, size = 0x9000, scoped, tag = 'internal scratch']
  %s0 = inlined_call_operand.vmem [shape: f32[2,16,128], index: 0, kind: input, shape index: {}]
  %s1 = inlined_call_operand.vmem [shape: f32[1,128], index: 1, kind: input, shape index: {}]
  %s2 = inlined_call_operand.vmem [shape: f32[1,128], index: 2, kind: input, shape index: {}]
  %s3 = inlined_call_operand.vmem [shape: f32[2,16,128], index: 3, kind: output, shape index: {}]
  %s4 = sld [smem:[#allocation0]]
  $region45: #{double_conv.5} parent=0
    _
  %s6 = ssub.s32 1, %s4
  %s7 = scalar_select 0, %s6, %s4
  loop: start=0, step=1, limit=4
  $region2: #{double_conv.5} parent=0 // loop_pre_header
    _
  $region3: #{double_conv.5} parent=0 // loop_header
    %s9 = sphi 0, %s13
    %p10 = scmp.ge.s32.totalorder %s9, 4
    %s19 = sphi 0, %s21
    %s22 = sphi 0, %s19
    %s23 = sphi 0, %s22
    %s39 = sphi 0, %s23
    %s43 = sphi 0, %s43
    %s45 = sphi 0, %s43
    %s46 = sphi 0, %s45
    %s60 = sphi 0, %s46
    %s64 = sphi 0, %s64
    %s66 = sphi 0, %s64
    %s67 = sphi 0, %s66
    %s81 = sphi 0, %s67
    %s87 = sphi 0, %s89
    %s90 = sphi 0, %s87
    %s91 = sphi 0, %s90
    %s107 = sphi 0, %s91
  $region4: #{double_conv.5} parent=0 // loop_header_branch
    %12 = sbr.rel (%p10) target = $region8
  $region5: #{double_conv.5} parent=0 // loop_body
    %s14 = ssub.s32 %s9, 1
    %s15 = ssub.s32 %s9, 2
    %s16 = sadd.s32 %s9, 1
    %s17 = ssub.s32 %s9, %s16
    %p18 = scmp.eq.s32.totalorder %s17, 0
    %s20 = sadd.s32 %s19, 1
    %s21 = scalar_select %p18, %s19, %s20
    %p24 = pneg %p18
    %p25 = scmp.eq.s32.totalorder %s9, 1
    %p26 = por %p24, %p25
    %p27 = scmp.ne.s32.totalorder %s19, %s22
    %p28 = scmp.eq.s32.totalorder %s9, 0
    %p29 = por %p27, %p28
    %p30 = scmp.ne.s32.totalorder %s19, %s22
    %p31 = scmp.eq.s32.totalorder %s14, 1
    %p32 = por %p30, %p31
    %p33 = scmp.ne.s32.totalorder %s22, %s23
    %p34 = scmp.eq.s32.totalorder %s14, 0
    %p35 = por %p33, %p34
    %p36 = scmp.ne.s32.totalorder %s22, %s23
    %p37 = scmp.eq.s32.totalorder %s15, 1
    %p38 = por %p36, %p37
    %p40 = scmp.ne.s32.totalorder %s23, %s39
    %p41 = scmp.eq.s32.totalorder %s15, 0
    %p42 = por %p40, %p41
    %s44 = sadd.s32 %s43, 1
    %p47 = scmp.eq.s32.totalorder %s9, 1
    %p48 = scmp.ne.s32.totalorder %s43, %s45
    %p49 = scmp.eq.s32.totalorder %s9, 0
    %p50 = por %p48, %p49
    %p51 = scmp.ne.s32.totalorder %s43, %s45
    %p52 = scmp.eq.s32.totalorder %s14, 1
    %p53 = por %p51, %p52
    %p54 = scmp.ne.s32.totalorder %s45, %s46
    %p55 = scmp.eq.s32.totalorder %s14, 0
    %p56 = por %p54, %p55
    %p57 = scmp.ne.s32.totalorder %s45, %s46
    %p58 = scmp.eq.s32.totalorder %s15, 1
    %p59 = por %p57, %p58
    %p61 = scmp.ne.s32.totalorder %s46, %s60
    %p62 = scmp.eq.s32.totalorder %s15, 0
    %p63 = por %p61, %p62
    %s65 = sadd.s32 %s64, 1
    %p68 = scmp.eq.s32.totalorder %s9, 1
    %p69 = scmp.ne.s32.totalorder %s64, %s66
    %p70 = scmp.eq.s32.totalorder %s9, 0
    %p71 = por %p69, %p70
    %p72 = scmp.ne.s32.totalorder %s64, %s66
    %p73 = scmp.eq.s32.totalorder %s14, 1
    %p74 = por %p72, %p73
    %p75 = scmp.ne.s32.totalorder %s66, %s67
    %p76 = scmp.eq.s32.totalorder %s14, 0
    %p77 = por %p75, %p76
    %p78 = scmp.ne.s32.totalorder %s66, %s67
    %p79 = scmp.eq.s32.totalorder %s15, 1
    %p80 = por %p78, %p79
    %p82 = scmp.ne.s32.totalorder %s67, %s81
    %p83 = scmp.eq.s32.totalorder %s15, 0
    %p84 = por %p82, %p83
    %s85 = ssub.s32 %s9, %s16
    %p86 = scmp.eq.s32.totalorder %s85, 0
    %s88 = sadd.s32 %s87, 1
    %s89 = scalar_select %p86, %s87, %s88
    %p92 = pneg %p86
    %p93 = scmp.eq.s32.totalorder %s9, 1
    %p94 = por %p92, %p93
    %p95 = scmp.ne.s32.totalorder %s87, %s90
    %p96 = scmp.eq.s32.totalorder %s9, 0
    %p97 = por %p95, %p96
    %p98 = scmp.ne.s32.totalorder %s87, %s90
    %p99 = scmp.eq.s32.totalorder %s14, 1
    %p100 = por %p98, %p99
    %p101 = scmp.ne.s32.totalorder %s90, %s91
    %p102 = scmp.eq.s32.totalorder %s14, 0
    %p103 = por %p101, %p102
    %p104 = scmp.ne.s32.totalorder %s90, %s91
    %p105 = scmp.eq.s32.totalorder %s15, 1
    %p106 = por %p104, %p105
    %p108 = scmp.ne.s32.totalorder %s91, %s107
    %p109 = scmp.eq.s32.totalorder %s15, 0
    %p110 = por %p108, %p109
    %p111 = scmp.le.s32.totalorder 1, %s9
    %p112 = scmp.lt.s32.totalorder %s9, 3
    %p113 = pnand %p111, %p112
    %p114 = pneg %p113
    // Predicated region
    $region9: #{double_conv.5} parent=5 // pred_check
      _
    $region10: #{double_conv.5} parent=5 // pred_check_branch
      %116 = sbr.rel (%p113) target = $region12
    $region11: #{double_conv.5} parent=5 // pred_region
      %s117 = ssub.s32 %s9, 1
      // Predicated region
      $region13: #{double_conv.5} parent=11 // pred_check
        %p118 = pneg %p56
      $region14: #{double_conv.5} parent=11 // pred_check_branch
        %120 = sbr.rel (%p118) target = $region16
      $region15: #{double_conv.5} parent=11 // pred_region
        _
      $region16: #{double_conv.5} parent=11 // pred_fallthru
        _
      // Predicated region
      $region17: #{double_conv.5} parent=11 // pred_check
        %p121 = pneg %p77
      $region18: #{double_conv.5} parent=11 // pred_check_branch
        %123 = sbr.rel (%p121) target = $region20
      $region19: #{double_conv.5} parent=11 // pred_region
        _
      $region20: #{double_conv.5} parent=11 // pred_fallthru
        _
    $region12: #{double_conv.5} parent=5 // pred_fallthru
      _
    %p124 = scmp.lt.s32.totalorder %s9, 2
    // Predicated region
    $region21: #{double_conv.5} parent=5 // pred_check
      %p125 = pneg %p124
    $region22: #{double_conv.5} parent=5 // pred_check_branch
      %127 = sbr.rel (%p125) target = $region24
    $region23: #{double_conv.5} parent=5 // pred_region
      // Predicated region
      $region25: #{double_conv.5} parent=23 // pred_check
        %p128 = pneg %p29
      $region26: #{double_conv.5} parent=23 // pred_check_branch
        %130 = sbr.rel (%p128) target = $region28
      $region27: #{double_conv.5} parent=23 // pred_region
        %p131 = scmp.lt.s32.totalorder %s9, 1
        %s132 = scalar_select %p131, %s9, 1
        %s133 = smul.addr %s132, 2
        %s134 = smul.addr %s133, 8
        %s135 = scalar_lea.vmem %s0, %s134
      $region28: #{double_conv.5} parent=23 // pred_fallthru
        _
    $region24: #{double_conv.5} parent=5 // pred_fallthru
      _
    %p136 = scmp.le.s32.totalorder 1, %s9
    %p137 = scmp.lt.s32.totalorder %s9, 3
    %p138 = pnand %p136, %p137
    %p139 = pneg %p138
    // Predicated region
    $region29: #{double_conv.5} parent=5 // pred_check
      _
    $region30: #{double_conv.5} parent=5 // pred_check_branch
      %141 = sbr.rel (%p138) target = $region32
    $region31: #{double_conv.5} parent=5 // pred_region
      %s142 = ssub.s32 %s9, 1
      %p143 = scmp.lt.s32.totalorder %s14, 1
      %s144 = scalar_select %p143, %s14, 1
      %s145 = smul.addr %s144, 2
      %s146 = smul.addr %s145, 8
      %s147 = scalar_lea.vmem %s0, %s146
      %p148 = pneg %p35
      %p149 = pneg %p32
      %p150 = pneg %p56
      %p151 = pneg %p53
      %p152 = pneg %p77
      %p153 = pneg %p74
      %p154 = pneg %p103
      %p155 = pneg %p100
      %p156 = scmp.lt.s32.totalorder %s14, 1
      %s157 = scalar_select %p156, %s14, 1
      %s158 = smul.addr %s157, 2
      %s159 = smul.addr %s158, 8
      %s160 = scalar_lea.vmem %s3, %s159
      %p161 = scmp.lt.s32.totalorder %s14, 1
      %s162 = scalar_select %p161, %s14, 1
      %s163 = smul.addr %s162, 2
      %s164 = smul.addr %s163, 8
      %s165 = scalar_lea.vmem %s0, %s164
      %p166 = scmp.lt.s32.totalorder %s14, 1
      %s167 = scalar_select %p166, %s14, 1
      %s168 = smul.addr %s167, 2
      %s169 = smul.addr %s168, 8
      %s170 = scalar_lea.vmem %s3, %s169
      %v171 = vld [vmem:[%s165] sm:$0xff]
      %v172 = vld [vmem:[%s165 + $0x8] sm:$0xff]
      %v173 = vld [vmem:[%s1] sm:$0x1]
      %v175 = vperm.slane %v173, 0
      %v177 = vmul.f32 %v171, %v175
      %v178 = vmul.f32 %v172, %v175
      %v179 = vld [vmem:[%s2] sm:$0x1]
      %v181 = vperm.slane %v179, 0
      %v183 = vadd.f32 %v177, %v181
      %v184 = vadd.f32 %v178, %v181
      %v185 = vmax.f32 %v183, 0.0
      %v186 = vmax.f32 %v184, 0.0
      %187 = vst [vmem:[%s170] sm:$0xff] %v185
      %188 = vst [vmem:[%s170 + $0x8] sm:$0xff] %v186
      %p189 = scmp.lt.s32.totalorder %s14, 1
      %s190 = scalar_select %p189, %s14, 1
      %s191 = smul.addr %s190, 2
      %s192 = smul.addr %s191, 8
      %s193 = scalar_lea.vmem %s3, %s192
      // Predicated region
      $region33: #{double_conv.5} parent=31 // pred_check
        %p194 = pneg %p100
      $region34: #{double_conv.5} parent=31 // pred_check_branch
        %196 = sbr.rel (%p194) target = $region36
      $region35: #{double_conv.5} parent=31 // pred_region
        _
      $region36: #{double_conv.5} parent=31 // pred_fallthru
        _
    $region32: #{double_conv.5} parent=5 // pred_fallthru
      _
    %p197 = scmp.le.s32.totalorder 2, %s9
    // Predicated region
    $region37: #{double_conv.5} parent=5 // pred_check
      %p198 = pneg %p197
    $region38: #{double_conv.5} parent=5 // pred_check_branch
      %200 = sbr.rel (%p198) target = $region40
    $region39: #{double_conv.5} parent=5 // pred_region
      %s201 = ssub.s32 %s9, 2
      // Predicated region
      $region41: #{double_conv.5} parent=39 // pred_check
        %p202 = pneg %p106
      $region42: #{double_conv.5} parent=39 // pred_check_branch
        %204 = sbr.rel (%p202) target = $region44
      $region43: #{double_conv.5} parent=39 // pred_region
        %p205 = scmp.lt.s32.totalorder %s15, 1
        %s206 = scalar_select %p205, %s15, 1
        %s207 = smul.addr %s206, 2
        %s208 = smul.addr %s207, 8
        %s209 = scalar_lea.vmem %s3, %s208
      $region44: #{double_conv.5} parent=39 // pred_fallthru
        _
    $region40: #{double_conv.5} parent=5 // pred_fallthru
      _
  $region6: #{double_conv.5} parent=0 // loop_footer
    %s13 = sadd.s32 1, %s9
  $region7: #{double_conv.5} parent=0 // loop_footer_branch
    %8 = sbr.rel target = $region3
  $region8: #{double_conv.5} parent=0 // loop_exit
    _

// kernel: double_conv.4
$region0: #{double_conv.4}
  #allocation0 [shape = 'u32[]', space=smem, size = 0x4, offset = 0x4, fixed_abs, tag = 'smem constant byte address 0x4 - core index']
  #allocation1 [shape = 'u32[72,128]{1,0:T(1,128)}', space=vmem, size = 0x9000, scoped, tag = 'internal scratch']
  %s0 = inlined_call_operand.vmem [shape: f32[2,16,128], index: 0, kind: input, shape index: {}]
  %s1 = inlined_call_operand.vmem [shape: f32[3,128,128], index: 1, kind: input, shape index: {}]
  %s2 = inlined_call_operand.vmem [shape: f32[1,128], index: 2, kind: input, shape index: {}]
  %s3 = inlined_call_operand.vmem [shape: f32[1,128], index: 3, kind: input, shape index: {}]
  %s4 = inlined_call_operand.vmem [shape: f32[2,16,128], index: 4, kind: output, shape index: {0}]
  %s5 = inlined_call_operand.vmem [shape: f32[2,2,128], index: 5, kind: output, shape index: {1}]
  %6 = xla_tuple %s4, %s5
  %s7 = sld [smem:[#allocation0]]
  $region57: #{double_conv.4} parent=0
    _
  %s9 = ssub.s32 1, %s7
  %s10 = scalar_select 0, %s9, %s7
  loop: start=0, step=1, limit=4
  $region2: #{double_conv.4} parent=0 // loop_pre_header
    _
  $region3: #{double_conv.4} parent=0 // loop_header
    %s12 = sphi 0, %s16
    %p13 = scmp.ge.s32.totalorder %s12, 4
    %s22 = sphi 0, %s24
    %s25 = sphi 0, %s22
    %s26 = sphi 0, %s25
    %s42 = sphi 0, %s26
    %s46 = sphi 0, %s46
    %s48 = sphi 0, %s46
    %s49 = sphi 0, %s48
    %s63 = sphi 0, %s49
    %s67 = sphi 0, %s67
    %s69 = sphi 0, %s67
    %s70 = sphi 0, %s69
    %s84 = sphi 0, %s70
    %s88 = sphi 0, %s88
    %s90 = sphi 0, %s88
    %s91 = sphi 0, %s90
    %s105 = sphi 0, %s91
    %s111 = sphi 0, %s113
    %s114 = sphi 0, %s111
    %s115 = sphi 0, %s114
    %s131 = sphi 0, %s115
    %s137 = sphi 0, %s139
    %s140 = sphi 0, %s137
    %s141 = sphi 0, %s140
    %s157 = sphi 0, %s141
  $region4: #{double_conv.4} parent=0 // loop_header_branch
    %15 = sbr.rel (%p13) target = $region8
  $region5: #{double_conv.4} parent=0 // loop_body
    %s17 = ssub.s32 %s12, 1
    %s18 = ssub.s32 %s12, 2
    %s19 = sadd.s32 %s12, 1
    %s20 = ssub.s32 %s12, %s19
    %p21 = scmp.eq.s32.totalorder %s20, 0
    %s23 = sadd.s32 %s22, 1
    %s24 = scalar_select %p21, %s22, %s23
    %p27 = pneg %p21
    %p28 = scmp.eq.s32.totalorder %s12, 1
    %p29 = por %p27, %p28
    %p30 = scmp.ne.s32.totalorder %s22, %s25
    %p31 = scmp.eq.s32.totalorder %s12, 0
    %p32 = por %p30, %p31
    %p33 = scmp.ne.s32.totalorder %s22, %s25
    %p34 = scmp.eq.s32.totalorder %s17, 1
    %p35 = por %p33, %p34
    %p36 = scmp.ne.s32.totalorder %s25, %s26
    %p37 = scmp.eq.s32.totalorder %s17, 0
    %p38 = por %p36, %p37
    %p39 = scmp.ne.s32.totalorder %s25, %s26
    %p40 = scmp.eq.s32.totalorder %s18, 1
    %p41 = por %p39, %p40
    %p43 = scmp.ne.s32.totalorder %s26, %s42
    %p44 = scmp.eq.s32.totalorder %s18, 0
    %p45 = por %p43, %p44
    %s47 = sadd.s32 %s46, 1
    %p50 = scmp.eq.s32.totalorder %s12, 1
    %p51 = scmp.ne.s32.totalorder %s46, %s48
    %p52 = scmp.eq.s32.totalorder %s12, 0
    %p53 = por %p51, %p52
    %p54 = scmp.ne.s32.totalorder %s46, %s48
    %p55 = scmp.eq.s32.totalorder %s17, 1
    %p56 = por %p54, %p55
    %p57 = scmp.ne.s32.totalorder %s48, %s49
    %p58 = scmp.eq.s32.totalorder %s17, 0
    %p59 = por %p57, %p58
    %p60 = scmp.ne.s32.totalorder %s48, %s49
    %p61 = scmp.eq.s32.totalorder %s18, 1
    %p62 = por %p60, %p61
    %p64 = scmp.ne.s32.totalorder %s49, %s63
    %p65 = scmp.eq.s32.totalorder %s18, 0
    %p66 = por %p64, %p65
    %s68 = sadd.s32 %s67, 1
    %p71 = scmp.eq.s32.totalorder %s12, 1
    %p72 = scmp.ne.s32.totalorder %s67, %s69
    %p73 = scmp.eq.s32.totalorder %s12, 0
    %p74 = por %p72, %p73
    %p75 = scmp.ne.s32.totalorder %s67, %s69
    %p76 = scmp.eq.s32.totalorder %s17, 1
    %p77 = por %p75, %p76
    %p78 = scmp.ne.s32.totalorder %s69, %s70
    %p79 = scmp.eq.s32.totalorder %s17, 0
    %p80 = por %p78, %p79
    %p81 = scmp.ne.s32.totalorder %s69, %s70
    %p82 = scmp.eq.s32.totalorder %s18, 1
    %p83 = por %p81, %p82
    %p85 = scmp.ne.s32.totalorder %s70, %s84
    %p86 = scmp.eq.s32.totalorder %s18, 0
    %p87 = por %p85, %p86
    %s89 = sadd.s32 %s88, 1
    %p92 = scmp.eq.s32.totalorder %s12, 1
    %p93 = scmp.ne.s32.totalorder %s88, %s90
    %p94 = scmp.eq.s32.totalorder %s12, 0
    %p95 = por %p93, %p94
    %p96 = scmp.ne.s32.totalorder %s88, %s90
    %p97 = scmp.eq.s32.totalorder %s17, 1
    %p98 = por %p96, %p97
    %p99 = scmp.ne.s32.totalorder %s90, %s91
    %p100 = scmp.eq.s32.totalorder %s17, 0
    %p101 = por %p99, %p100
    %p102 = scmp.ne.s32.totalorder %s90, %s91
    %p103 = scmp.eq.s32.totalorder %s18, 1
    %p104 = por %p102, %p103
    %p106 = scmp.ne.s32.totalorder %s91, %s105
    %p107 = scmp.eq.s32.totalorder %s18, 0
    %p108 = por %p106, %p107
    %s109 = ssub.s32 %s12, %s19
    %p110 = scmp.eq.s32.totalorder %s109, 0
    %s112 = sadd.s32 %s111, 1
    %s113 = scalar_select %p110, %s111, %s112
    %p116 = pneg %p110
    %p117 = scmp.eq.s32.totalorder %s12, 1
    %p118 = por %p116, %p117
    %p119 = scmp.ne.s32.totalorder %s111, %s114
    %p120 = scmp.eq.s32.totalorder %s12, 0
    %p121 = por %p119, %p120
    %p122 = scmp.ne.s32.totalorder %s111, %s114
    %p123 = scmp.eq.s32.totalorder %s17, 1
    %p124 = por %p122, %p123
    %p125 = scmp.ne.s32.totalorder %s114, %s115
    %p126 = scmp.eq.s32.totalorder %s17, 0
    %p127 = por %p125, %p126
    %p128 = scmp.ne.s32.totalorder %s114, %s115
    %p129 = scmp.eq.s32.totalorder %s18, 1
    %p130 = por %p128, %p129
    %p132 = scmp.ne.s32.totalorder %s115, %s131
    %p133 = scmp.eq.s32.totalorder %s18, 0
    %p134 = por %p132, %p133
    %s135 = ssub.s32 %s12, %s19
    %p136 = scmp.eq.s32.totalorder %s135, 0
    %s138 = sadd.s32 %s137, 1
    %s139 = scalar_select %p136, %s137, %s138
    %p142 = pneg %p136
    %p143 = scmp.eq.s32.totalorder %s12, 1
    %p144 = por %p142, %p143
    %p145 = scmp.ne.s32.totalorder %s137, %s140
    %p146 = scmp.eq.s32.totalorder %s12, 0
    %p147 = por %p145, %p146
    %p148 = scmp.ne.s32.totalorder %s137, %s140
    %p149 = scmp.eq.s32.totalorder %s17, 1
    %p150 = por %p148, %p149
    %p151 = scmp.ne.s32.totalorder %s140, %s141
    %p152 = scmp.eq.s32.totalorder %s17, 0
    %p153 = por %p151, %p152
    %p154 = scmp.ne.s32.totalorder %s140, %s141
    %p155 = scmp.eq.s32.totalorder %s18, 1
    %p156 = por %p154, %p155
    %p158 = scmp.ne.s32.totalorder %s141, %s157
    %p159 = scmp.eq.s32.totalorder %s18, 0
    %p160 = por %p158, %p159
    %p161 = scmp.le.s32.totalorder 1, %s12
    %p162 = scmp.lt.s32.totalorder %s12, 3
    %p163 = pnand %p161, %p162
    %p164 = pneg %p163
    // Predicated region
    $region9: #{double_conv.4} parent=5 // pred_check
      _
    $region10: #{double_conv.4} parent=5 // pred_check_branch
      %166 = sbr.rel (%p163) target = $region12
    $region11: #{double_conv.4} parent=5 // pred_region
      %s167 = ssub.s32 %s12, 1
      // Predicated region
      $region13: #{double_conv.4} parent=11 // pred_check
        %p168 = pneg %p59
      $region14: #{double_conv.4} parent=11 // pred_check_branch
        %170 = sbr.rel (%p168) target = $region16
      $region15: #{double_conv.4} parent=11 // pred_region
        _
      $region16: #{double_conv.4} parent=11 // pred_fallthru
        _
      // Predicated region
      $region17: #{double_conv.4} parent=11 // pred_check
        %p171 = pneg %p80
      $region18: #{double_conv.4} parent=11 // pred_check_branch
        %173 = sbr.rel (%p171) target = $region20
      $region19: #{double_conv.4} parent=11 // pred_region
        _
      $region20: #{double_conv.4} parent=11 // pred_fallthru
        _
      // Predicated region
      $region21: #{double_conv.4} parent=11 // pred_check
        %p174 = pneg %p101
      $region22: #{double_conv.4} parent=11 // pred_check_branch
        %176 = sbr.rel (%p174) target = $region24
      $region23: #{double_conv.4} parent=11 // pred_region
        _
      $region24: #{double_conv.4} parent=11 // pred_fallthru
        _
    $region12: #{double_conv.4} parent=5 // pred_fallthru
      _
    %p177 = scmp.lt.s32.totalorder %s12, 2
    // Predicated region
    $region25: #{double_conv.4} parent=5 // pred_check
      %p178 = pneg %p177
    $region26: #{double_conv.4} parent=5 // pred_check_branch
      %180 = sbr.rel (%p178) target = $region28
    $region27: #{double_conv.4} parent=5 // pred_region
      // Predicated region
      $region29: #{double_conv.4} parent=27 // pred_check
        %p181 = pneg %p32
      $region30: #{double_conv.4} parent=27 // pred_check_branch
        %183 = sbr.rel (%p181) target = $region32
      $region31: #{double_conv.4} parent=27 // pred_region
        %p184 = scmp.lt.s32.totalorder %s12, 1
        %s185 = scalar_select %p184, %s12, 1
        %s186 = smul.addr %s185, 2
        %s187 = smul.addr %s186, 8
        %s188 = scalar_lea.vmem %s0, %s187
      $region32: #{double_conv.4} parent=27 // pred_fallthru
        _
    $region28: #{double_conv.4} parent=5 // pred_fallthru
      _
    %p189 = scmp.le.s32.totalorder 1, %s12
    %p190 = scmp.lt.s32.totalorder %s12, 3
    %p191 = pnand %p189, %p190
    %p192 = pneg %p191
    // Predicated region
    $region33: #{double_conv.4} parent=5 // pred_check
      _
    $region34: #{double_conv.4} parent=5 // pred_check_branch
      %194 = sbr.rel (%p191) target = $region36
    $region35: #{double_conv.4} parent=5 // pred_region
      %s195 = ssub.s32 %s12, 1
      %p196 = scmp.lt.s32.totalorder %s17, 1
      %s197 = scalar_select %p196, %s17, 1
      %s198 = smul.addr %s197, 2
      %s199 = smul.addr %s198, 8
      %s200 = scalar_lea.vmem %s0, %s199
      %p201 = pneg %p38
      %p202 = pneg %p35
      %p203 = pneg %p59
      %p204 = pneg %p56
      %p205 = pneg %p80
      %p206 = pneg %p77
      %p207 = pneg %p101
      %p208 = pneg %p98
      %p209 = pneg %p127
      %p210 = pneg %p124
      %p211 = scmp.lt.s32.totalorder %s17, 1
      %s212 = scalar_select %p211, %s17, 1
      %s213 = smul.addr %s212, 2
      %s214 = smul.addr %s213, 8
      %s215 = scalar_lea.vmem %s4, %s214
      %p216 = pneg %p153
      %p217 = pneg %p150
      %p218 = scmp.lt.s32.totalorder %s17, 1
      %s219 = scalar_select %p218, %s17, 1
      %s220 = smul.addr %s219, 2
      %s221 = scalar_lea.vmem %s5, %s220
      %p222 = scmp.lt.s32.totalorder %s17, 1
      %s223 = scalar_select %p222, %s17, 1
      %s224 = smul.addr %s223, 2
      %s225 = smul.addr %s224, 8
      %s226 = scalar_lea.vmem %s0, %s225
      %p227 = scmp.lt.s32.totalorder %s17, 1
      %s228 = scalar_select %p227, %s17, 1
      %s229 = smul.addr %s228, 2
      %s230 = smul.addr %s229, 8
      %s231 = scalar_lea.vmem %s4, %s230
      %p232 = scmp.lt.s32.totalorder %s17, 1
      %s233 = scalar_select %p232, %s17, 1
      %s234 = smul.addr %s233, 2
      %s235 = scalar_lea.vmem %s5, %s234
      %v236 = vld [vmem:[%s226] sm:$0xff]
      %v237 = vld [vmem:[%s226 + $0x8] sm:$0xff]
      %v238 = vld [vmem:[%s2] sm:$0x1]
      %v240 = vperm.slane %v238, 0
      %v242 = vmul.f32 %v236, %v240
      %v243 = vmul.f32 %v237, %v240
      %v244 = vld [vmem:[%s3] sm:$0x1]
      %v246 = vperm.slane %v244, 0
      %v248 = vadd.f32 %v242, %v246
      %v249 = vadd.f32 %v243, %v246
      %v250 = vmax.f32 %v248, 0.0
      %v251 = vmax.f32 %v249, 0.0
      %s252 = scalar_lea.vmem %s1, 128
      %v253 = vld [vmem:[%s252] sm:$0xff]
      %v254 = vld [vmem:[%s252 + $0x8] sm:$0xff]
      %v255 = vld [vmem:[%s252 + $0x10] sm:$0xff]
      %v256 = vld [vmem:[%s252 + $0x18] sm:$0xff]
      %v257 = vld [vmem:[%s252 + $0x20] sm:$0xff]
      %v258 = vld [vmem:[%s252 + $0x28] sm:$0xff]
      %v259 = vld [vmem:[%s252 + $0x30] sm:$0xff]
      %v260 = vld [vmem:[%s252 + $0x38] sm:$0xff]
      %v261 = vld [vmem:[%s252 + $0x40] sm:$0xff]
      %v262 = vld [vmem:[%s252 + $0x48] sm:$0xff]
      %v263 = vld [vmem:[%s252 + $0x50] sm:$0xff]
      %v264 = vld [vmem:[%s252 + $0x58] sm:$0xff]
      %v265 = vld [vmem:[%s252 + $0x60] sm:$0xff]
      %v266 = vld [vmem:[%s252 + $0x68] sm:$0xff]
      %v267 = vld [vmem:[%s252 + $0x70] sm:$0xff]
      %v268 = vld [vmem:[%s252 + $0x78] sm:$0xff]
      %v269 = vld [vmem:[%s1] sm:$0xff]
      %v270 = vld [vmem:[%s1 + $0x8] sm:$0xff]
      %v271 = vld [vmem:[%s1 + $0x10] sm:$0xff]
      %v272 = vld [vmem:[%s1 + $0x18] sm:$0xff]
      %v273 = vld [vmem:[%s1 + $0x20] sm:$0xff]
      %v274 = vld [vmem:[%s1 + $0x28] sm:$0xff]
      %v275 = vld [vmem:[%s1 + $0x30] sm:$0xff]
      %v276 = vld [vmem:[%s1 + $0x38] sm:$0xff]
      %v277 = vld [vmem:[%s1 + $0x40] sm:$0xff]
      %v278 = vld [vmem:[%s1 + $0x48] sm:$0xff]
      %v279 = vld [vmem:[%s1 + $0x50] sm:$0xff]
      %v280 = vld [vmem:[%s1 + $0x58] sm:$0xff]
      %v281 = vld [vmem:[%s1 + $0x60] sm:$0xff]
      %v282 = vld [vmem:[%s1 + $0x68] sm:$0xff]
      %v283 = vld [vmem:[%s1 + $0x70] sm:$0xff]
      %v284 = vld [vmem:[%s1 + $0x78] sm:$0xff]
      %285 = vmatpush.msra.mxu0 %v284
      %286 = vmatpush.msra.mxu0 %v283
      %287 = vmatpush.msra.mxu0 %v282
      %288 = vmatpush.msra.mxu0 %v281
      %289 = vmatpush.msra.mxu0 %v280
      %290 = vmatpush.msra.mxu0 %v279
      %291 = vmatpush.msra.mxu0 %v278
      %292 = vmatpush.msra.mxu0 %v277
      %293 = vmatpush.msra.mxu0 %v276
      %294 = vmatpush.msra.mxu0 %v275
      %295 = vmatpush.msra.mxu0 %v274
      %296 = vmatpush.msra.mxu0 %v273
      %297 = vmatpush.msra.mxu0 %v272
      %298 = vmatpush.msra.mxu0 %v271
      %299 = vmatpush.msra.mxu0 %v270
      %300 = vmatpush.msra.mxu0 %v269
      %301 = vmatmul.f32.gmra.mxu0 %v250
      %v302 = vpop.f32.mrf.mxu0
      %v303 = vadd.f32 0.0, %v302
      %304 = vmatmul.f32.gmra.mxu0 %v251
      %v305 = vpop.f32.mrf.mxu0
      %v306 = vadd.f32 0.0, %v305
      %307 = vdwg.mxu0
      %s308 = scalar_lea.vmem %s1, 256
      %v309 = vld [vmem:[%s308] sm:$0xff]
      %v310 = vld [vmem:[%s308 + $0x8] sm:$0xff]
      %v311 = vld [vmem:[%s308 + $0x10] sm:$0xff]
      %v312 = vld [vmem:[%s308 + $0x18] sm:$0xff]
      %v313 = vld [vmem:[%s308 + $0x20] sm:$0xff]
      %v314 = vld [vmem:[%s308 + $0x28] sm:$0xff]
      %v315 = vld [vmem:[%s308 + $0x30] sm:$0xff]
      %v316 = vld [vmem:[%s308 + $0x38] sm:$0xff]
      %v317 = vld [vmem:[%s308 + $0x40] sm:$0xff]
      %v318 = vld [vmem:[%s308 + $0x48] sm:$0xff]
      %v319 = vld [vmem:[%s308 + $0x50] sm:$0xff]
      %v320 = vld [vmem:[%s308 + $0x58] sm:$0xff]
      %v321 = vld [vmem:[%s308 + $0x60] sm:$0xff]
      %v322 = vld [vmem:[%s308 + $0x68] sm:$0xff]
      %v323 = vld [vmem:[%s308 + $0x70] sm:$0xff]
      %v324 = vld [vmem:[%s308 + $0x78] sm:$0xff]
      %325 = vmatpush.msra.mxu0 %v324
      %326 = vmatpush.msra.mxu0 %v323
      %327 = vmatpush.msra.mxu0 %v322
      %328 = vmatpush.msra.mxu0 %v321
      %329 = vmatpush.msra.mxu0 %v320
      %330 = vmatpush.msra.mxu0 %v319
      %331 = vmatpush.msra.mxu0 %v318
      %332 = vmatpush.msra.mxu0 %v317
      %333 = vmatpush.msra.mxu0 %v316
      %334 = vmatpush.msra.mxu0 %v315
      %335 = vmatpush.msra.mxu0 %v314
      %336 = vmatpush.msra.mxu0 %v313
      %337 = vmatpush.msra.mxu0 %v312
      %338 = vmatpush.msra.mxu0 %v311
      %339 = vmatpush.msra.mxu0 %v310
      %340 = vmatpush.msra.mxu0 %v309
      %341 = vmatmul.f32.gmra.mxu0 %v250
      %v342 = vpop.f32.mrf.mxu0
      %v343 = vadd.f32 0.0, %v342
      %344 = vmatmul.f32.gmra.mxu0 %v251
      %v345 = vpop.f32.mrf.mxu0
      %v346 = vadd.f32 0.0, %v345
      %347 = vdwg.mxu0
      %vm350 = vcmask 1040384
      %v351 = vrot.slane %v303, 7
      %v352 = vrot.slane %v306, 7
      %v353 = vsel %vm350, %v351, %v352
      %v356 = vsel %vm350, 0.0, %v351
      %357 = vmatpush.msra.mxu0 %v268
      %358 = vmatpush.msra.mxu0 %v267
      %359 = vmatpush.msra.mxu0 %v266
      %360 = vmatpush.msra.mxu0 %v265
      %361 = vmatpush.msra.mxu0 %v264
      %362 = vmatpush.msra.mxu0 %v263
      %363 = vmatpush.msra.mxu0 %v262
      %364 = vmatpush.msra.mxu0 %v261
      %365 = vmatpush.msra.mxu0 %v260
      %366 = vmatpush.msra.mxu0 %v259
      %367 = vmatpush.msra.mxu0 %v258
      %368 = vmatpush.msra.mxu0 %v257
      %369 = vmatpush.msra.mxu0 %v256
      %370 = vmatpush.msra.mxu0 %v255
      %371 = vmatpush.msra.mxu0 %v254
      %372 = vmatpush.msra.mxu0 %v253
      %373 = vmatmul.f32.gmra.mxu0 %v250
      %v374 = vpop.f32.mrf.mxu0
      %v375 = vadd.f32 %v356, %v374
      %376 = vmatmul.f32.gmra.mxu0 %v251
      %v377 = vpop.f32.mrf.mxu0
      %v378 = vadd.f32 %v353, %v377
      %379 = vdwg.mxu0
      %vm382 = vcmask 1046528
      %v383 = vrot.slane %v343, 1
      %v384 = vrot.slane %v346, 1
      %v385 = vsel %vm382, %v383, %v384
      %v388 = vsel %vm382, %v384, 0.0
      %v389 = vadd.f32 %v375, %v385
      %v390 = vadd.f32 %v378, %v388
      %391 = vst [vmem:[%s231] sm:$0xff] %v389
      %392 = vst [vmem:[%s231 + $0x8] sm:$0xff] %v390
      %v393 = vadd.f32 %v389, %v390
      %v394 = vrot.slane %v393, 4
      %v395 = vadd.f32 %v393, %v394
      %v396 = vrot.slane %v395, 2
      %v397 = vadd.f32 %v395, %v396
      %v398 = vrot.slane %v397, 1
      %v399 = vadd.f32 %v397, %v398
      %v400 = vmul.f32 %v389, %v389
      %v401 = vmul.f32 %v390, %v390
      %v402 = vadd.f32 %v400, %v401
      %v403 = vrot.slane %v402, 4
      %v404 = vadd.f32 %v402, %v403
      %v405 = vrot.slane %v404, 2
      %v406 = vadd.f32 %v404, %v405
      %v407 = vrot.slane %v406, 1
      %v408 = vadd.f32 %v406, %v407
      %v409 = vsel %vm350, %v399, %v408
      %410 = vst [vmem:[%s235] sm:$0x3] %v409
      %p411 = scmp.lt.s32.totalorder %s17, 1
      %s412 = scalar_select %p411, %s17, 1
      %s413 = smul.addr %s412, 2
      %s414 = smul.addr %s413, 8
      %s415 = scalar_lea.vmem %s4, %s414
      %p416 = scmp.lt.s32.totalorder %s17, 1
      %s417 = scalar_select %p416, %s17, 1
      %s418 = smul.addr %s417, 2
      %s419 = scalar_lea.vmem %s5, %s418
      // Predicated region
      $region37: #{double_conv.4} parent=35 // pred_check
        %p420 = pneg %p124
      $region38: #{double_conv.4} parent=35 // pred_check_branch
        %422 = sbr.rel (%p420) target = $region40
      $region39: #{double_conv.4} parent=35 // pred_region
        _
      $region40: #{double_conv.4} parent=35 // pred_fallthru
        _
      // Predicated region
      $region41: #{double_conv.4} parent=35 // pred_check
        %p423 = pneg %p150
      $region42: #{double_conv.4} parent=35 // pred_check_branch
        %425 = sbr.rel (%p423) target = $region44
      $region43: #{double_conv.4} parent=35 // pred_region
        _
      $region44: #{double_conv.4} parent=35 // pred_fallthru
        _
    $region36: #{double_conv.4} parent=5 // pred_fallthru
      _
    %p426 = scmp.le.s32.totalorder 2, %s12
    // Predicated region
    $region45: #{double_conv.4} parent=5 // pred_check
      %p427 = pneg %p426
    $region46: #{double_conv.4} parent=5 // pred_check_branch
      %429 = sbr.rel (%p427) target = $region48
    $region47: #{double_conv.4} parent=5 // pred_region
      %s430 = ssub.s32 %s12, 2
      // Predicated region
      $region49: #{double_conv.4} parent=47 // pred_check
        %p431 = pneg %p130
      $region50: #{double_conv.4} parent=47 // pred_check_branch
        %433 = sbr.rel (%p431) target = $region52
      $region51: #{double_conv.4} parent=47 // pred_region
        %p434 = scmp.lt.s32.totalorder %s18, 1
        %s435 = scalar_select %p434, %s18, 1
        %s436 = smul.addr %s435, 2
        %s437 = smul.addr %s436, 8
        %s438 = scalar_lea.vmem %s4, %s437
      $region52: #{double_conv.4} parent=47 // pred_fallthru
        _
      // Predicated region
      $region53: #{double_conv.4} parent=47 // pred_check
        %p439 = pneg %p156
      $region54: #{double_conv.4} parent=47 // pred_check_branch
        %441 = sbr.rel (%p439) target = $region56
      $region55: #{double_conv.4} parent=47 // pred_region
        %p442 = scmp.lt.s32.totalorder %s18, 1
        %s443 = scalar_select %p442, %s18, 1
        %s444 = smul.addr %s443, 2
        %s445 = scalar_lea.vmem %s5, %s444
      $region56: #{double_conv.4} parent=47 // pred_fallthru
        _
    $region48: #{double_conv.4} parent=5 // pred_fallthru
      _
  $region6: #{double_conv.4} parent=0 // loop_footer
    %s16 = sadd.s32 1, %s12
  $region7: #{double_conv.4} parent=0 // loop_footer_branch
    %11 = sbr.rel target = $region3
  $region8: #{double_conv.4} parent=0 // loop_exit
    _

</llo_original>
